<compile_context>
chip_gen: v6e
topology: v6e:2x2x1
jax: 0.10.0
libtpu: 0.0.40
codegen_flags: <defaults>
</compile_context>

<pallas_src>
import functools

import jax
import jax.numpy as jnp
from jax import lax
from jax.experimental import pallas as pl
from jax.experimental.pallas import tpu as pltpu

# ----------------------------- config ---------------------------------------
HIDDEN = 128          # transformer_hidden_size (small synthetic value)
BOX_DIM = 64          # args.box_dim
N_PROJ_LAYERS = 2     # n_proj_layer
SIM_TEMP = 0.1        # Similarity(temp=0.1)
ENT_TEMP = 0.05       # args.ent2sen_temp
N_PAIRS = 8           # number of (fact_1, fact_2) / (src_1, src_2) pairs


# --------------------------- fused Pallas kernel -----------------------------
def _cl_for_fact_kernel(fact_ref, src_ref, srcfact_ref, labels_ref,
                        wgn_ref, wf_ref, bias_ref, loss_ref, *,
                        n_layers, n_pairs, hidden, box_dim,
                        sim_inv_temp, ent_inv_temp):
    n = n_pairs
    h = hidden

    # ---- in-kernel pair deinterleave (projection is row-order independent) --
    xf1 = fact_ref[pl.ds(0, n, stride=2), :].astype(jnp.float32)    # fact_1
    xf2 = fact_ref[pl.ds(1, n, stride=2), :].astype(jnp.float32)    # fact_2
    xs1 = src_ref[pl.ds(0, n, stride=2), :].astype(jnp.float32)     # src_1
    xs2 = src_ref[pl.ds(1, n, stride=2), :].astype(jnp.float32)     # src_2
    xsf = srcfact_ref[...].astype(jnp.float32)                      # fact_in_src

    x_rel = jnp.concatenate([xf1, xf2], axis=0)          # [2N, H]
    x_sen = jnp.concatenate([xs1, xs2, xsf], axis=0)     # [3N, H]

    def highway(x, p):
        # Packed gate|nonlinear weights: one [H, 2H] MXU push per layer.
        # TODO(synk): Dropout(p=0.2) treated as identity.
        hcur = x
        for l in range(n_layers):                         # static unroll
            gn = jnp.dot(hcur.astype(jnp.bfloat16), wgn_ref[p, l],
                         preferred_element_type=jnp.float32) + bias_ref[p, l]
            g = jax.nn.sigmoid(gn[:, :h])
            nl = jnp.maximum(gn[:, h:], 0.0)
            hcur = g * nl + (1.0 - g) * hcur
        out = jnp.dot(hcur.astype(jnp.bfloat16), wf_ref[p],
                      preferred_element_type=jnp.float32)
        return out + bias_ref[p, n_layers][:, :box_dim]

    def l2norm(x):
        ss = jnp.sum(x * x, axis=-1, keepdims=True)
        return x * lax.rsqrt(jnp.maximum(ss, 1e-16))

    rel_n = l2norm(highway(x_rel, 0))                     # [2N, D]
    sen_n = l2norm(highway(x_sen, 1))                     # [3N, D]

    fact_1, fact_2 = rel_n[0:n], rel_n[n:2 * n]
    src_1, src_2 = sen_n[0:n], sen_n[n:2 * n]
    fact_insrc = sen_n[2 * n:3 * n]

    # ---- all similarity blocks in ONE MXU push ------------------------------
    # temps and the 0.4/0.6 blend are linear in the row operand -> fold them.
    rows = jnp.concatenate(
        [src_1 * sim_inv_temp,                                        # block 0
         fact_1 * sim_inv_temp,                                       # block 1
         (0.4 * ent_inv_temp) * src_1 + (0.6 * ent_inv_temp) * fact_insrc],
        axis=0)                                           # [3N, D]
    cols = jnp.concatenate([src_2, fact_2, fact_1], axis=0)  # [3N, D]
    logits = lax.dot_general(rows, cols, (((1,), (1,)), ((), ())),
                             preferred_element_type=jnp.float32)  # [3N, 3N]

    # block-diagonal validity: row block k only scores against column block k.
    r_iota = lax.broadcasted_iota(jnp.int32, (3 * n, 3 * n), 0)
    c_iota = lax.broadcasted_iota(jnp.int32, (3 * n, 3 * n), 1)
    blk_r = (r_iota >= n).astype(jnp.int32) + (r_iota >= 2 * n).astype(jnp.int32)
    blk_c = (c_iota >= n).astype(jnp.int32) + (c_iota >= 2 * n).astype(jnp.int32)
    valid = blk_r == blk_c

    # global label column: blocks 0/1 (sen2sen, fact2fact) use the diagonal,
    # block 2 (fact2sen) uses fact_labels.
    diag_col = lax.broadcasted_iota(jnp.int32, (2 * n, 1), 0)
    labels_global = jnp.concatenate([diag_col, labels_ref[...] + 2 * n], axis=0)
    pick = c_iota == labels_global                        # [3N, 3N]

    # ---- fused 3-block softmax cross-entropy (mean) -------------------------
    neg = jnp.float32(-1e30)
    masked = jnp.where(valid, logits, neg)
    mx = jnp.max(masked, axis=-1, keepdims=True)
    lse = mx + jnp.log(jnp.sum(jnp.exp(masked - mx), axis=-1, keepdims=True))
    picked = jnp.sum(jnp.where(pick, logits, 0.0), axis=-1, keepdims=True)
    per_row = lse - picked                                # [3N, 1]

    inv_n = jnp.float32(1.0 / n)
    l_s2s = jnp.sum(per_row[0:n]) * inv_n
    l_f2f = jnp.sum(per_row[n:2 * n]) * inv_n
    l_f2s = jnp.sum(per_row[2 * n:3 * n]) * inv_n

    # lane-dense output row: losses in lanes 0..2, zeros elsewhere.
    lane = lax.broadcasted_iota(jnp.int32, (1, loss_ref.shape[-1]), 1)
    loss_ref[...] = jnp.where(lane == 0, l_s2s,
                    jnp.where(lane == 1, l_f2f,
                    jnp.where(lane == 2, l_f2s, jnp.float32(0.0))))


# ------------------------ parameter initialization --------------------------
def _linear_init(key, fan_in, fan_out, zero_bias=False):
    # Mimics torch.nn.Linear default: U(-1/sqrt(fan_in), 1/sqrt(fan_in)).
    # Weight stored pre-transposed as [in, out].
    k = 1.0 / jnp.sqrt(jnp.float32(fan_in))
    kw, kb = jax.random.split(key)
    w = jax.random.uniform(kw, (fan_in, fan_out), jnp.float32, -k, k)
    if zero_bias:
        b = jnp.zeros((1, fan_out), jnp.float32)
    else:
        b = jax.random.uniform(kb, (1, fan_out), jnp.float32, -k, k)
    return w, b


def init_cl_for_fact_params(key, hidden, box_dim, n_layers):
    """Packed params for BOTH projections (index 0 = rel, 1 = sen):
       wgn_all  [2, L, H, 2H]  bf16  (columns [:H] = gate, [H:] = nonlinear)
       wf_all   [2, H, D]      bf16
       bias_all [2, L+1, 1, 2H] f32  (rows 0..L-1 gate|nonlinear biases,
                                      row L = final bias padded with zeros)."""
    def one_highway(k):
        keys = jax.random.split(k, 2 * n_layers + 1)
        wgn_l, bgn_l = [], []
        for l in range(n_layers):
            wn, bn = _linear_init(keys[2 * l], hidden, hidden)
            # gate bias forced to 0.0 in HighwayNetwork.__init__
            wg, bg = _linear_init(keys[2 * l + 1], hidden, hidden,
                                  zero_bias=True)
            wgn_l.append(jnp.concatenate([wg, wn], axis=1))   # [H, 2H]
            bgn_l.append(jnp.concatenate([bg, bn], axis=1))   # [1, 2H]
        wf, bf = _linear_init(keys[-1], hidden, box_dim)
        wgn = jnp.stack(wgn_l)                                # [L, H, 2H]
        bgn = jnp.stack(bgn_l)[:, None, :, :].reshape(n_layers, 1, 2 * hidden)
        bf_pad = jnp.zeros((1, 1, 2 * hidden), jnp.float32)
        bf_pad = bf_pad.at[0, 0, :box_dim].set(bf[0])
        bias = jnp.concatenate([bgn.reshape(n_layers, 1, 2 * hidden),
                                bf_pad.reshape(1, 1, 2 * hidden)], axis=0)
        return wgn, wf, bias                                  # [L+1, 1, 2H]

    k_rel, k_sen = jax.random.split(key)
    rel = one_highway(k_rel)
    sen = one_highway(k_sen)
    wgn_all = jnp.stack([rel[0], sen[0]]).astype(jnp.bfloat16)   # [2, L, H, 2H]
    wf_all = jnp.stack([rel[1], sen[1]]).astype(jnp.bfloat16)    # [2, H, D]
    bias_all = jnp.stack([rel[2], sen[2]])                       # [2, L+1, 1, 2H]
    return wgn_all, wf_all, bias_all


# ------------------------------ forward -------------------------------------
@jax.jit
def cl_for_fact_forward(params, fact_emb, src_emb, src_fact, fact_labels):
    """data_tp training branch of cl_for_fact.forward.

    fact_emb:  [2N, H]  pooled embeddings of fact pairs (interleaved x1,x2,...)
    src_emb:   [2N, H]  pooled embeddings of source-sentence pairs (interleaved)
    src_fact:  [N,  H]  pooled embeddings of fact-in-source sentences
    fact_labels: [N] int labels for the fact2sen loss
    Returns (sen2sen_loss, fact2fact_loss, fact2sen_loss).
    """
    wgn_all, wf_all, bias_all = params
    n = fact_emb.shape[0] // 2
    h = fact_emb.shape[-1]
    d = wf_all.shape[-1]
    n_layers = wgn_all.shape[1]

    labels2d = fact_labels.astype(jnp.int32).reshape(n, 1)

    vmem = pl.BlockSpec(memory_space=pltpu.MemorySpace.VMEM)

    # advisory cost hint so XLA does not serialize neighbours around the call
    flops = 2 * (5 * n) * (n_layers * h * 2 * h + h * d) + 2 * (3 * n) * d * (3 * n)
    transcendentals = (5 * n) * h * n_layers + (3 * n) * (3 * n) + 8 * n
    bytes_accessed = ((5 * n * h + n) * 4 + wgn_all.size * 2 + wf_all.size * 2
                      + bias_all.size * 4 + 128 * 4)

    losses = pl.pallas_call(
        functools.partial(_cl_for_fact_kernel,
                          n_layers=n_layers, n_pairs=n, hidden=h, box_dim=d,
                          sim_inv_temp=1.0 / SIM_TEMP,
                          ent_inv_temp=1.0 / ENT_TEMP),
        out_shape=jax.ShapeDtypeStruct((1, 128), jnp.float32),
        in_specs=[vmem] * 7,
        out_specs=vmem,
        cost_estimate=pl.CostEstimate(flops=int(flops),
                                      transcendentals=int(transcendentals),
                                      bytes_accessed=int(bytes_accessed)),
    )(fact_emb, src_emb, src_fact, labels2d, wgn_all, wf_all, bias_all)

    return losses[0, 0], losses[0, 1], losses[0, 2]


# ------------------------------- main ----------------------------------------
if __name__ == "__main__":
    key = jax.random.PRNGKey(0)
    k_p, k_fact, k_src, k_sf = jax.random.split(key, 4)

    params = init_cl_for_fact_params(k_p, HIDDEN, BOX_DIM, N_PROJ_LAYERS)

    fact_emb = jax.random.normal(k_fact, (2 * N_PAIRS, HIDDEN), jnp.float32)
    src_emb = jax.random.normal(k_src, (2 * N_PAIRS, HIDDEN), jnp.float32)
    src_fact = jax.random.normal(k_sf, (N_PAIRS, HIDDEN), jnp.float32)
    fact_labels = jnp.arange(N_PAIRS, dtype=jnp.int32)

    losses = cl_for_fact_forward(params, fact_emb, src_emb, src_fact,
                                 fact_labels)
    losses = jax.block_until_ready(losses)

    vals = jnp.array([float(x) for x in losses])
    assert bool(jnp.all(jnp.isfinite(vals)))
    print("KERNEL_OK")
</pallas_src>

<mosaic_0001>
module attributes {stable_mosaic.version = 11 : i64} {
  func.func @_cl_for_fact_kernel(%arg0: memref<16x128xf32, #tpu.memory_space<vmem>>, %arg1: memref<16x128xf32, #tpu.memory_space<vmem>>, %arg2: memref<8x128xf32, #tpu.memory_space<vmem>>, %arg3: memref<8x1xi32, #tpu.memory_space<vmem>>, %arg4: memref<2x2x128x256xbf16, #tpu.memory_space<vmem>>, %arg5: memref<2x128x64xbf16, #tpu.memory_space<vmem>>, %arg6: memref<2x3x1x256xf32, #tpu.memory_space<vmem>>, %arg7: memref<1x128xf32, #tpu.memory_space<vmem>>) attributes {dimension_semantics = [], scalar_prefetch = 0 : i64, scratch_operands = 0 : i64, tpu.core_type = #tpu.core_type<tc>} {
    %c0 = arith.constant 0 : index
    %c0_0 = arith.constant 0 : index
    %0 = tpu.strided_load %arg0[%c0, %c0_0] {strides = array<i32: 2, 1>} : memref<16x128xf32, #tpu.memory_space<vmem>>, vector<8x128xf32>
    %c1 = arith.constant 1 : index
    %c0_1 = arith.constant 0 : index
    %1 = tpu.strided_load %arg0[%c1, %c0_1] {strides = array<i32: 2, 1>} : memref<16x128xf32, #tpu.memory_space<vmem>>, vector<8x128xf32>
    %c0_2 = arith.constant 0 : index
    %c0_3 = arith.constant 0 : index
    %2 = tpu.strided_load %arg1[%c0_2, %c0_3] {strides = array<i32: 2, 1>} : memref<16x128xf32, #tpu.memory_space<vmem>>, vector<8x128xf32>
    %c1_4 = arith.constant 1 : index
    %c0_5 = arith.constant 0 : index
    %3 = tpu.strided_load %arg1[%c1_4, %c0_5] {strides = array<i32: 2, 1>} : memref<16x128xf32, #tpu.memory_space<vmem>>, vector<8x128xf32>
    %c0_6 = arith.constant 0 : index
    %c0_7 = arith.constant 0 : index
    %4 = vector.load %arg2[%c0_6, %c0_7] : memref<8x128xf32, #tpu.memory_space<vmem>>, vector<8x128xf32>
    %5 = tpu.concatenate %0, %1 in 0 : vector<8x128xf32>, vector<8x128xf32> -> vector<16x128xf32>
    %6 = tpu.concatenate %2, %3, %4 in 0 : vector<8x128xf32>, vector<8x128xf32>, vector<8x128xf32> -> vector<24x128xf32>
    %7 = arith.truncf %5 : vector<16x128xf32> to vector<16x128xbf16>
    %c0_8 = arith.constant 0 : index
    %c0_9 = arith.constant 0 : index
    %c0_10 = arith.constant 0 : index
    %c0_11 = arith.constant 0 : index
    %8 = vector.load %arg4[%c0_8, %c0_9, %c0_10, %c0_11] : memref<2x2x128x256xbf16, #tpu.memory_space<vmem>>, vector<1x1x128x256xbf16>
    %9 = vector.shape_cast %8 : vector<1x1x128x256xbf16> to vector<128x256xbf16>
    %cst = arith.constant dense<0.000000e+00> : vector<16x256xf32>
    %10 = tpu.matmul %7, %9, %cst {dimension_numbers = #tpu.dot_dimension_numbers<[1], [0], [0], [1], [0, 0, 1, 1], [], []>} : vector<16x128xbf16>, vector<128x256xbf16>, vector<16x256xf32> -> vector<16x256xf32>
    %c0_12 = arith.constant 0 : index
    %c0_13 = arith.constant 0 : index
    %c0_14 = arith.constant 0 : index
    %c0_15 = arith.constant 0 : index
    %11 = vector.load %arg6[%c0_12, %c0_13, %c0_14, %c0_15] : memref<2x3x1x256xf32, #tpu.memory_space<vmem>>, vector<1x1x1x256xf32>
    %12 = vector.shape_cast %11 : vector<1x1x1x256xf32> to vector<1x256xf32>
    %13 = vector.broadcast %12 : vector<1x256xf32> to vector<16x256xf32>
    %14 = arith.addf %10, %13 : vector<16x256xf32>
    %15 = vector.extract_strided_slice %14 {offsets = [0, 0], sizes = [16, 128], strides = [1, 1]} : vector<16x256xf32> to vector<16x128xf32>
    %16 = arith.negf %15 : vector<16x128xf32>
    %17 = math.exp %16 : vector<16x128xf32>
    %cst_16 = arith.constant 1.000000e+00 : f32
    %18 = vector.broadcast %cst_16 : f32 to vector<16x128xf32>
    %19 = arith.addf %18, %17 : vector<16x128xf32>
    %20 = arith.divf %18, %19 : vector<16x128xf32>
    %21 = vector.extract_strided_slice %14 {offsets = [0, 128], sizes = [16, 128], strides = [1, 1]} : vector<16x256xf32> to vector<16x128xf32>
    %cst_17 = arith.constant 0.000000e+00 : f32
    %22 = vector.broadcast %cst_17 : f32 to vector<16x128xf32>
    %23 = arith.maximumf %21, %22 : vector<16x128xf32>
    %24 = arith.mulf %20, %23 : vector<16x128xf32>
    %cst_18 = arith.constant 1.000000e+00 : f32
    %25 = vector.broadcast %cst_18 : f32 to vector<16x128xf32>
    %26 = arith.subf %25, %20 : vector<16x128xf32>
    %27 = arith.mulf %26, %5 : vector<16x128xf32>
    %28 = arith.addf %24, %27 : vector<16x128xf32>
    %29 = arith.truncf %28 : vector<16x128xf32> to vector<16x128xbf16>
    %c0_19 = arith.constant 0 : index
    %c1_20 = arith.constant 1 : index
    %c0_21 = arith.constant 0 : index
    %c0_22 = arith.constant 0 : index
    %30 = vector.load %arg4[%c0_19, %c1_20, %c0_21, %c0_22] : memref<2x2x128x256xbf16, #tpu.memory_space<vmem>>, vector<1x1x128x256xbf16>
    %31 = vector.shape_cast %30 : vector<1x1x128x256xbf16> to vector<128x256xbf16>
    %cst_23 = arith.constant dense<0.000000e+00> : vector<16x256xf32>
    %32 = tpu.matmul %29, %31, %cst_23 {dimension_numbers = #tpu.dot_dimension_numbers<[1], [0], [0], [1], [0, 0, 1, 1], [], []>} : vector<16x128xbf16>, vector<128x256xbf16>, vector<16x256xf32> -> vector<16x256xf32>
    %c0_24 = arith.constant 0 : index
    %c1_25 = arith.constant 1 : index
    %c0_26 = arith.constant 0 : index
    %c0_27 = arith.constant 0 : index
    %33 = vector.load %arg6[%c0_24, %c1_25, %c0_26, %c0_27] : memref<2x3x1x256xf32, #tpu.memory_space<vmem>>, vector<1x1x1x256xf32>
    %34 = vector.shape_cast %33 : vector<1x1x1x256xf32> to vector<1x256xf32>
    %35 = vector.broadcast %34 : vector<1x256xf32> to vector<16x256xf32>
    %36 = arith.addf %32, %35 : vector<16x256xf32>
    %37 = vector.extract_strided_slice %36 {offsets = [0, 0], sizes = [16, 128], strides = [1, 1]} : vector<16x256xf32> to vector<16x128xf32>
    %38 = arith.negf %37 : vector<16x128xf32>
    %39 = math.exp %38 : vector<16x128xf32>
    %cst_28 = arith.constant 1.000000e+00 : f32
    %40 = vector.broadcast %cst_28 : f32 to vector<16x128xf32>
    %41 = arith.addf %40, %39 : vector<16x128xf32>
    %42 = arith.divf %40, %41 : vector<16x128xf32>
    %43 = vector.extract_strided_slice %36 {offsets = [0, 128], sizes = [16, 128], strides = [1, 1]} : vector<16x256xf32> to vector<16x128xf32>
    %cst_29 = arith.constant 0.000000e+00 : f32
    %44 = vector.broadcast %cst_29 : f32 to vector<16x128xf32>
    %45 = arith.maximumf %43, %44 : vector<16x128xf32>
    %46 = arith.mulf %42, %45 : vector<16x128xf32>
    %cst_30 = arith.constant 1.000000e+00 : f32
    %47 = vector.broadcast %cst_30 : f32 to vector<16x128xf32>
    %48 = arith.subf %47, %42 : vector<16x128xf32>
    %49 = arith.mulf %48, %28 : vector<16x128xf32>
    %50 = arith.addf %46, %49 : vector<16x128xf32>
    %51 = arith.truncf %50 : vector<16x128xf32> to vector<16x128xbf16>
    %c0_31 = arith.constant 0 : index
    %c0_32 = arith.constant 0 : index
    %c0_33 = arith.constant 0 : index
    %52 = vector.load %arg5[%c0_31, %c0_32, %c0_33] : memref<2x128x64xbf16, #tpu.memory_space<vmem>>, vector<1x128x64xbf16>
    %53 = vector.shape_cast %52 : vector<1x128x64xbf16> to vector<128x64xbf16>
    %cst_34 = arith.constant dense<0.000000e+00> : vector<16x64xf32>
    %54 = tpu.matmul %51, %53, %cst_34 {dimension_numbers = #tpu.dot_dimension_numbers<[1], [0], [0], [1], [0, 0, 1, 1], [], []>} : vector<16x128xbf16>, vector<128x64xbf16>, vector<16x64xf32> -> vector<16x64xf32>
    %c0_35 = arith.constant 0 : index
    %c2 = arith.constant 2 : index
    %c0_36 = arith.constant 0 : index
    %c0_37 = arith.constant 0 : index
    %55 = vector.load %arg6[%c0_35, %c2, %c0_36, %c0_37] : memref<2x3x1x256xf32, #tpu.memory_space<vmem>>, vector<1x1x1x256xf32>
    %56 = vector.shape_cast %55 : vector<1x1x1x256xf32> to vector<1x256xf32>
    %57 = vector.extract_strided_slice %56 {offsets = [0, 0], sizes = [1, 64], strides = [1, 1]} : vector<1x256xf32> to vector<1x64xf32>
    %58 = vector.broadcast %57 : vector<1x64xf32> to vector<16x64xf32>
    %59 = arith.addf %54, %58 : vector<16x64xf32>
    %60 = arith.mulf %59, %59 : vector<16x64xf32>
    %cst_38 = arith.constant dense<0.000000e+00> : vector<16xf32>
    %61 = vector.multi_reduction <add>, %60, %cst_38 [1] : vector<16x64xf32> to vector<16xf32>
    %62 = vector.shape_cast %61 : vector<16xf32> to vector<16x1xf32>
    %cst_39 = arith.constant 1.000000e-16 : f32
    %63 = vector.broadcast %cst_39 : f32 to vector<16x1xf32>
    %64 = arith.maximumf %62, %63 : vector<16x1xf32>
    %65 = math.rsqrt %64 : vector<16x1xf32>
    %66 = vector.broadcast %65 : vector<16x1xf32> to vector<16x64xf32>
    %67 = arith.mulf %59, %66 : vector<16x64xf32>
    %68 = arith.truncf %6 : vector<24x128xf32> to vector<24x128xbf16>
    %c1_40 = arith.constant 1 : index
    %c0_41 = arith.constant 0 : index
    %c0_42 = arith.constant 0 : index
    %c0_43 = arith.constant 0 : index
    %69 = vector.load %arg4[%c1_40, %c0_41, %c0_42, %c0_43] : memref<2x2x128x256xbf16, #tpu.memory_space<vmem>>, vector<1x1x128x256xbf16>
    %70 = vector.shape_cast %69 : vector<1x1x128x256xbf16> to vector<128x256xbf16>
    %cst_44 = arith.constant dense<0.000000e+00> : vector<24x256xf32>
    %71 = tpu.matmul %68, %70, %cst_44 {dimension_numbers = #tpu.dot_dimension_numbers<[1], [0], [0], [1], [0, 0, 1, 1], [], []>} : vector<24x128xbf16>, vector<128x256xbf16>, vector<24x256xf32> -> vector<24x256xf32>
    %c1_45 = arith.constant 1 : index
    %c0_46 = arith.constant 0 : index
    %c0_47 = arith.constant 0 : index
    %c0_48 = arith.constant 0 : index
    %72 = vector.load %arg6[%c1_45, %c0_46, %c0_47, %c0_48] : memref<2x3x1x256xf32, #tpu.memory_space<vmem>>, vector<1x1x1x256xf32>
    %73 = vector.shape_cast %72 : vector<1x1x1x256xf32> to vector<1x256xf32>
    %74 = vector.broadcast %73 : vector<1x256xf32> to vector<24x256xf32>
    %75 = arith.addf %71, %74 : vector<24x256xf32>
    %76 = vector.extract_strided_slice %75 {offsets = [0, 0], sizes = [24, 128], strides = [1, 1]} : vector<24x256xf32> to vector<24x128xf32>
    %77 = arith.negf %76 : vector<24x128xf32>
    %78 = math.exp %77 : vector<24x128xf32>
    %cst_49 = arith.constant 1.000000e+00 : f32
    %79 = vector.broadcast %cst_49 : f32 to vector<24x128xf32>
    %80 = arith.addf %79, %78 : vector<24x128xf32>
    %81 = arith.divf %79, %80 : vector<24x128xf32>
    %82 = vector.extract_strided_slice %75 {offsets = [0, 128], sizes = [24, 128], strides = [1, 1]} : vector<24x256xf32> to vector<24x128xf32>
    %cst_50 = arith.constant 0.000000e+00 : f32
    %83 = vector.broadcast %cst_50 : f32 to vector<24x128xf32>
    %84 = arith.maximumf %82, %83 : vector<24x128xf32>
    %85 = arith.mulf %81, %84 : vector<24x128xf32>
    %cst_51 = arith.constant 1.000000e+00 : f32
    %86 = vector.broadcast %cst_51 : f32 to vector<24x128xf32>
    %87 = arith.subf %86, %81 : vector<24x128xf32>
    %88 = arith.mulf %87, %6 : vector<24x128xf32>
    %89 = arith.addf %85, %88 : vector<24x128xf32>
    %90 = arith.truncf %89 : vector<24x128xf32> to vector<24x128xbf16>
    %c1_52 = arith.constant 1 : index
    %c1_53 = arith.constant 1 : index
    %c0_54 = arith.constant 0 : index
    %c0_55 = arith.constant 0 : index
    %91 = vector.load %arg4[%c1_52, %c1_53, %c0_54, %c0_55] : memref<2x2x128x256xbf16, #tpu.memory_space<vmem>>, vector<1x1x128x256xbf16>
    %92 = vector.shape_cast %91 : vector<1x1x128x256xbf16> to vector<128x256xbf16>
    %cst_56 = arith.constant dense<0.000000e+00> : vector<24x256xf32>
    %93 = tpu.matmul %90, %92, %cst_56 {dimension_numbers = #tpu.dot_dimension_numbers<[1], [0], [0], [1], [0, 0, 1, 1], [], []>} : vector<24x128xbf16>, vector<128x256xbf16>, vector<24x256xf32> -> vector<24x256xf32>
    %c1_57 = arith.constant 1 : index
    %c1_58 = arith.constant 1 : index
    %c0_59 = arith.constant 0 : index
    %c0_60 = arith.constant 0 : index
    %94 = vector.load %arg6[%c1_57, %c1_58, %c0_59, %c0_60] : memref<2x3x1x256xf32, #tpu.memory_space<vmem>>, vector<1x1x1x256xf32>
    %95 = vector.shape_cast %94 : vector<1x1x1x256xf32> to vector<1x256xf32>
    %96 = vector.broadcast %95 : vector<1x256xf32> to vector<24x256xf32>
    %97 = arith.addf %93, %96 : vector<24x256xf32>
    %98 = vector.extract_strided_slice %97 {offsets = [0, 0], sizes = [24, 128], strides = [1, 1]} : vector<24x256xf32> to vector<24x128xf32>
    %99 = arith.negf %98 : vector<24x128xf32>
    %100 = math.exp %99 : vector<24x128xf32>
    %cst_61 = arith.constant 1.000000e+00 : f32
    %101 = vector.broadcast %cst_61 : f32 to vector<24x128xf32>
    %102 = arith.addf %101, %100 : vector<24x128xf32>
    %103 = arith.divf %101, %102 : vector<24x128xf32>
    %104 = vector.extract_strided_slice %97 {offsets = [0, 128], sizes = [24, 128], strides = [1, 1]} : vector<24x256xf32> to vector<24x128xf32>
    %cst_62 = arith.constant 0.000000e+00 : f32
    %105 = vector.broadcast %cst_62 : f32 to vector<24x128xf32>
    %106 = arith.maximumf %104, %105 : vector<24x128xf32>
    %107 = arith.mulf %103, %106 : vector<24x128xf32>
    %cst_63 = arith.constant 1.000000e+00 : f32
    %108 = vector.broadcast %cst_63 : f32 to vector<24x128xf32>
    %109 = arith.subf %108, %103 : vector<24x128xf32>
    %110 = arith.mulf %109, %89 : vector<24x128xf32>
    %111 = arith.addf %107, %110 : vector<24x128xf32>
    %112 = arith.truncf %111 : vector<24x128xf32> to vector<24x128xbf16>
    %c1_64 = arith.constant 1 : index
    %c0_65 = arith.constant 0 : index
    %c0_66 = arith.constant 0 : index
    %113 = vector.load %arg5[%c1_64, %c0_65, %c0_66] : memref<2x128x64xbf16, #tpu.memory_space<vmem>>, vector<1x128x64xbf16>
    %114 = vector.shape_cast %113 : vector<1x128x64xbf16> to vector<128x64xbf16>
    %cst_67 = arith.constant dense<0.000000e+00> : vector<24x64xf32>
    %115 = tpu.matmul %112, %114, %cst_67 {dimension_numbers = #tpu.dot_dimension_numbers<[1], [0], [0], [1], [0, 0, 1, 1], [], []>} : vector<24x128xbf16>, vector<128x64xbf16>, vector<24x64xf32> -> vector<24x64xf32>
    %c1_68 = arith.constant 1 : index
    %c2_69 = arith.constant 2 : index
    %c0_70 = arith.constant 0 : index
    %c0_71 = arith.constant 0 : index
    %116 = vector.load %arg6[%c1_68, %c2_69, %c0_70, %c0_71] : memref<2x3x1x256xf32, #tpu.memory_space<vmem>>, vector<1x1x1x256xf32>
    %117 = vector.shape_cast %116 : vector<1x1x1x256xf32> to vector<1x256xf32>
    %118 = vector.extract_strided_slice %117 {offsets = [0, 0], sizes = [1, 64], strides = [1, 1]} : vector<1x256xf32> to vector<1x64xf32>
    %119 = vector.broadcast %118 : vector<1x64xf32> to vector<24x64xf32>
    %120 = arith.addf %115, %119 : vector<24x64xf32>
    %121 = arith.mulf %120, %120 : vector<24x64xf32>
    %cst_72 = arith.constant dense<0.000000e+00> : vector<24xf32>
    %122 = vector.multi_reduction <add>, %121, %cst_72 [1] : vector<24x64xf32> to vector<24xf32>
    %123 = vector.shape_cast %122 : vector<24xf32> to vector<24x1xf32>
    %cst_73 = arith.constant 1.000000e-16 : f32
    %124 = vector.broadcast %cst_73 : f32 to vector<24x1xf32>
    %125 = arith.maximumf %123, %124 : vector<24x1xf32>
    %126 = math.rsqrt %125 : vector<24x1xf32>
    %127 = vector.broadcast %126 : vector<24x1xf32> to vector<24x64xf32>
    %128 = arith.mulf %120, %127 : vector<24x64xf32>
    %129 = vector.extract_strided_slice %67 {offsets = [0, 0], sizes = [8, 64], strides = [1, 1]} : vector<16x64xf32> to vector<8x64xf32>
    %130 = vector.extract_strided_slice %67 {offsets = [8, 0], sizes = [8, 64], strides = [1, 1]} : vector<16x64xf32> to vector<8x64xf32>
    %131 = vector.extract_strided_slice %128 {offsets = [0, 0], sizes = [8, 64], strides = [1, 1]} : vector<24x64xf32> to vector<8x64xf32>
    %132 = vector.extract_strided_slice %128 {offsets = [8, 0], sizes = [8, 64], strides = [1, 1]} : vector<24x64xf32> to vector<8x64xf32>
    %133 = vector.extract_strided_slice %128 {offsets = [16, 0], sizes = [8, 64], strides = [1, 1]} : vector<24x64xf32> to vector<8x64xf32>
    %cst_74 = arith.constant 1.000000e+01 : f32
    %134 = vector.broadcast %cst_74 : f32 to vector<8x64xf32>
    %135 = arith.mulf %131, %134 : vector<8x64xf32>
    %cst_75 = arith.constant 1.000000e+01 : f32
    %136 = vector.broadcast %cst_75 : f32 to vector<8x64xf32>
    %137 = arith.mulf %129, %136 : vector<8x64xf32>
    %cst_76 = arith.constant 8.000000e+00 : f32
    %138 = vector.broadcast %cst_76 : f32 to vector<8x64xf32>
    %139 = arith.mulf %138, %131 : vector<8x64xf32>
    %cst_77 = arith.constant 1.200000e+01 : f32
    %140 = vector.broadcast %cst_77 : f32 to vector<8x64xf32>
    %141 = arith.mulf %140, %133 : vector<8x64xf32>
    %142 = arith.addf %139, %141 : vector<8x64xf32>
    %143 = tpu.concatenate %135, %137, %142 in 0 : vector<8x64xf32>, vector<8x64xf32>, vector<8x64xf32> -> vector<24x64xf32>
    %144 = tpu.concatenate %132, %130, %129 in 0 : vector<8x64xf32>, vector<8x64xf32>, vector<8x64xf32> -> vector<24x64xf32>
    %cst_78 = arith.constant dense<0.000000e+00> : vector<24x24xf32>
    %145 = tpu.matmul %143, %144, %cst_78 {dimension_numbers = #tpu.dot_dimension_numbers<[1], [1], [0], [0], [0, 0, 1, 0], [], []>} : vector<24x64xf32>, vector<24x64xf32>, vector<24x24xf32> -> vector<24x24xf32>
    %146 = tpu.iota {dimensions = array<i32: 0>} : vector<24x24xi32>
    %147 = tpu.iota {dimensions = array<i32: 1>} : vector<24x24xi32>
    %c8_i32 = arith.constant 8 : i32
    %148 = vector.broadcast %c8_i32 : i32 to vector<24x24xi32>
    %149 = arith.cmpi sge, %146, %148 : vector<24x24xi32>
    %150 = arith.extui %149 : vector<24x24xi1> to vector<24x24xi32>
    %c16_i32 = arith.constant 16 : i32
    %151 = vector.broadcast %c16_i32 : i32 to vector<24x24xi32>
    %152 = arith.cmpi sge, %146, %151 : vector<24x24xi32>
    %153 = arith.extui %152 : vector<24x24xi1> to vector<24x24xi32>
    %154 = arith.addi %150, %153 : vector<24x24xi32>
    %c8_i32_79 = arith.constant 8 : i32
    %155 = vector.broadcast %c8_i32_79 : i32 to vector<24x24xi32>
    %156 = arith.cmpi sge, %147, %155 : vector<24x24xi32>
    %157 = arith.extui %156 : vector<24x24xi1> to vector<24x24xi32>
    %c16_i32_80 = arith.constant 16 : i32
    %158 = vector.broadcast %c16_i32_80 : i32 to vector<24x24xi32>
    %159 = arith.cmpi sge, %147, %158 : vector<24x24xi32>
    %160 = arith.extui %159 : vector<24x24xi1> to vector<24x24xi32>
    %161 = arith.addi %157, %160 : vector<24x24xi32>
    %162 = arith.cmpi eq, %154, %161 : vector<24x24xi32>
    %163 = tpu.iota {dimensions = array<i32: 0>} : vector<16x1xi32>
    %c0_81 = arith.constant 0 : index
    %c0_82 = arith.constant 0 : index
    %164 = vector.load %arg3[%c0_81, %c0_82] : memref<8x1xi32, #tpu.memory_space<vmem>>, vector<8x1xi32>
    %c16_i32_83 = arith.constant 16 : i32
    %165 = vector.broadcast %c16_i32_83 : i32 to vector<8x1xi32>
    %166 = arith.addi %164, %165 : vector<8x1xi32>
    %167 = tpu.concatenate %163, %166 in 0 : vector<16x1xi32>, vector<8x1xi32> -> vector<24x1xi32>
    %168 = vector.broadcast %167 : vector<24x1xi32> to vector<24x24xi32>
    %169 = arith.cmpi eq, %147, %168 : vector<24x24xi32>
    %cst_84 = arith.constant -1.000000e+30 : f32
    %170 = vector.broadcast %cst_84 : f32 to vector<24x24xf32>
    %171 = arith.select %162, %145, %170 : vector<24x24xi1>, vector<24x24xf32>
    %cst_85 = arith.constant dense<0xFF800000> : vector<24xf32>
    %172 = vector.multi_reduction <maximumf>, %171, %cst_85 [1] : vector<24x24xf32> to vector<24xf32>
    %173 = vector.shape_cast %172 : vector<24xf32> to vector<24x1xf32>
    %174 = vector.broadcast %173 : vector<24x1xf32> to vector<24x24xf32>
    %175 = arith.subf %171, %174 : vector<24x24xf32>
    %176 = math.exp %175 : vector<24x24xf32>
    %cst_86 = arith.constant dense<0.000000e+00> : vector<24xf32>
    %177 = vector.multi_reduction <add>, %176, %cst_86 [1] : vector<24x24xf32> to vector<24xf32>
    %178 = vector.shape_cast %177 : vector<24xf32> to vector<24x1xf32>
    %179 = math.log %178 : vector<24x1xf32>
    %180 = arith.addf %173, %179 : vector<24x1xf32>
    %cst_87 = arith.constant 0.000000e+00 : f32
    %181 = vector.broadcast %cst_87 : f32 to vector<24x24xf32>
    %182 = arith.select %169, %145, %181 : vector<24x24xi1>, vector<24x24xf32>
    %cst_88 = arith.constant dense<0.000000e+00> : vector<24xf32>
    %183 = vector.multi_reduction <add>, %182, %cst_88 [1] : vector<24x24xf32> to vector<24xf32>
    %184 = vector.shape_cast %183 : vector<24xf32> to vector<24x1xf32>
    %185 = arith.subf %180, %184 : vector<24x1xf32>
    %186 = vector.extract_strided_slice %185 {offsets = [0, 0], sizes = [8, 1], strides = [1, 1]} : vector<24x1xf32> to vector<8x1xf32>
    %187 = vector.shape_cast %186 : vector<8x1xf32> to vector<1x8x1xf32>
    %cst_89 = arith.constant dense<0.000000e+00> : vector<1xf32>
    %188 = vector.multi_reduction <add>, %187, %cst_89 [1, 2] : vector<1x8x1xf32> to vector<1xf32>
    %189 = vector.shape_cast %188 : vector<1xf32> to vector<1x1x1xf32>
    %190 = vector.extract %189[0, 0, 0] : f32 from vector<1x1x1xf32>
    %cst_90 = arith.constant 1.250000e-01 : f32
    %191 = arith.mulf %190, %cst_90 : f32
    %192 = vector.extract_strided_slice %185 {offsets = [8, 0], sizes = [8, 1], strides = [1, 1]} : vector<24x1xf32> to vector<8x1xf32>
    %193 = vector.shape_cast %192 : vector<8x1xf32> to vector<1x8x1xf32>
    %cst_91 = arith.constant dense<0.000000e+00> : vector<1xf32>
    %194 = vector.multi_reduction <add>, %193, %cst_91 [1, 2] : vector<1x8x1xf32> to vector<1xf32>
    %195 = vector.shape_cast %194 : vector<1xf32> to vector<1x1x1xf32>
    %196 = vector.extract %195[0, 0, 0] : f32 from vector<1x1x1xf32>
    %cst_92 = arith.constant 1.250000e-01 : f32
    %197 = arith.mulf %196, %cst_92 : f32
    %198 = vector.extract_strided_slice %185 {offsets = [16, 0], sizes = [8, 1], strides = [1, 1]} : vector<24x1xf32> to vector<8x1xf32>
    %199 = vector.shape_cast %198 : vector<8x1xf32> to vector<1x8x1xf32>
    %cst_93 = arith.constant dense<0.000000e+00> : vector<1xf32>
    %200 = vector.multi_reduction <add>, %199, %cst_93 [1, 2] : vector<1x8x1xf32> to vector<1xf32>
    %201 = vector.shape_cast %200 : vector<1xf32> to vector<1x1x1xf32>
    %202 = vector.extract %201[0, 0, 0] : f32 from vector<1x1x1xf32>
    %cst_94 = arith.constant 1.250000e-01 : f32
    %203 = arith.mulf %202, %cst_94 : f32
    %204 = tpu.iota {dimensions = array<i32: 1>} : vector<1x128xi32>
    %c0_i32 = arith.constant 0 : i32
    %205 = vector.broadcast %c0_i32 : i32 to vector<1x128xi32>
    %206 = arith.cmpi eq, %204, %205 : vector<1x128xi32>
    %c1_i32 = arith.constant 1 : i32
    %207 = vector.broadcast %c1_i32 : i32 to vector<1x128xi32>
    %208 = arith.cmpi eq, %204, %207 : vector<1x128xi32>
    %c2_i32 = arith.constant 2 : i32
    %209 = vector.broadcast %c2_i32 : i32 to vector<1x128xi32>
    %210 = arith.cmpi eq, %204, %209 : vector<1x128xi32>
    %cst_95 = arith.constant 0.000000e+00 : f32
    %211 = vector.broadcast %203 : f32 to vector<1x128xf32>
    %212 = vector.broadcast %cst_95 : f32 to vector<1x128xf32>
    %213 = arith.select %210, %211, %212 : vector<1x128xi1>, vector<1x128xf32>
    %214 = vector.broadcast %197 : f32 to vector<1x128xf32>
    %215 = arith.select %208, %214, %213 : vector<1x128xi1>, vector<1x128xf32>
    %216 = vector.broadcast %191 : f32 to vector<1x128xf32>
    %217 = arith.select %206, %216, %215 : vector<1x128xi1>, vector<1x128xf32>
    %c0_96 = arith.constant 0 : index
    %c0_97 = arith.constant 0 : index
    %218 = vector.load %arg7[%c0_96, %c0_97] : memref<1x128xf32, #tpu.memory_space<vmem>>, vector<1x128xf32>
    tpu.vector_store %arg7[%c0_96, %c0_97], %217 {strides = array<i32>} : memref<1x128xf32, #tpu.memory_space<vmem>>, vector<1x128xf32>,
    return
  }
}

</mosaic_0001>

<llo_original>
// kernel: cl_for_fact_forward.1
$region0: #{cl_for_fact_forward.1}
  #allocation0 [shape = 'u32[]', space=smem, size = 0x4, offset = 0x4, fixed_abs, tag = 'smem constant byte address 0x4 - core index']
  #allocation1 [shape = 'u32[144,128]{1,0:T(1,128)}', space=vmem, size = 0x12000, scoped, tag = 'internal scratch']
  %s0 = inlined_call_operand.vmem [shape: f32[16,128], index: 0, kind: input, shape index: {}]
  %s1 = inlined_call_operand.vmem [shape: f32[16,128], index: 1, kind: input, shape index: {}]
  %s2 = inlined_call_operand.vmem [shape: f32[8,128], index: 2, kind: input, shape index: {}]
  %s3 = inlined_call_operand.vmem [shape: s32[8,1], index: 3, kind: input, shape index: {}]
  %s4 = inlined_call_operand.hbm [shape: bf16[2,2,128,256], index: 4, kind: input, shape index: {}]
  %s5 = inlined_call_operand.vmem [shape: bf16[2,128,64], index: 5, kind: input, shape index: {}]
  %s6 = inlined_call_operand.vmem [shape: f32[2,3,1,256], index: 6, kind: input, shape index: {}]
  %s7 = inlined_call_operand.vmem [shape: f32[1,128], index: 7, kind: output, shape index: {}]
  %s8 = sld [smem:[#allocation0]]
  $region42: #{cl_for_fact_forward.1} parent=0
    _
  %s10 = ssub.s32 1, %s8
  %s11 = scalar_select 0, %s10, %s8
  $region1: #{cl_for_fact_forward.1} parent=0
    #allocation2 [shape = 'u8[262144]{0}', space=vmem, size = 0x40000, scoped, tag = 'input window, operand 4, single buffered']
    #allocation3 [shape = 's32[1]{0}', space=sflag, size = 0x4, scoped, tag = 'scoped memory for cl_for_fact_forward.1']
    %12 = vsyncpa [#allocation3], 0
    // Predicated region
    $region2: #{cl_for_fact_forward.1} parent=1 // pred_check
      _
    $region3: #{cl_for_fact_forward.1} parent=1 // pred_check_branch
      %14 = sbr.rel (0) target = $region5
    $region4: #{cl_for_fact_forward.1} parent=1 // pred_region
      _
    $region5: #{cl_for_fact_forward.1} parent=1 // pred_fallthru
      _
    // Predicated region
    $region6: #{cl_for_fact_forward.1} parent=1 // pred_check
      _
    $region7: #{cl_for_fact_forward.1} parent=1 // pred_check_branch
      %16 = sbr.rel (0) target = $region9
    $region8: #{cl_for_fact_forward.1} parent=1 // pred_region
      _
    $region9: #{cl_for_fact_forward.1} parent=1 // pred_fallthru
      _
    // Predicated region
    $region10: #{cl_for_fact_forward.1} parent=1 // pred_check
      _
    $region11: #{cl_for_fact_forward.1} parent=1 // pred_check_branch
      %18 = sbr.rel (0) target = $region13
    $region12: #{cl_for_fact_forward.1} parent=1 // pred_region
      _
    $region13: #{cl_for_fact_forward.1} parent=1 // pred_fallthru
      _
    // Predicated region
    $region14: #{cl_for_fact_forward.1} parent=1 // pred_check
      _
    $region15: #{cl_for_fact_forward.1} parent=1 // pred_check_branch
      %20 = sbr.rel (0) target = $region17
    $region16: #{cl_for_fact_forward.1} parent=1 // pred_region
      _
    $region17: #{cl_for_fact_forward.1} parent=1 // pred_fallthru
      _
    // Predicated region
    $region18: #{cl_for_fact_forward.1} parent=1 // pred_check
      _
    $region19: #{cl_for_fact_forward.1} parent=1 // pred_check_branch
      %22 = sbr.rel (0) target = $region21
    $region20: #{cl_for_fact_forward.1} parent=1 // pred_region
      %s24 = ssub.s32 8192, 8192
      %25 = vsyncadd [#allocation3], %s24
      %s26 = sshll.u32 [#allocation2], 4
      %s27 = int_to_ptr.vmem [resolvable:$true] %s26
      %32 = dma.hbm_to_vmem [thread:$0]  %s4, 8192, %s27, [#allocation3], 128, 128, 8
    $region21: #{cl_for_fact_forward.1} parent=1 // pred_fallthru
      _
    // Predicated region
    $region22: #{cl_for_fact_forward.1} parent=1 // pred_check
      _
    $region23: #{cl_for_fact_forward.1} parent=1 // pred_check_branch
      %34 = sbr.rel (0) target = $region25
    $region24: #{cl_for_fact_forward.1} parent=1 // pred_region
      _
    $region25: #{cl_for_fact_forward.1} parent=1 // pred_fallthru
      _
    // Predicated region
    $region26: #{cl_for_fact_forward.1} parent=1 // pred_check
      _
    $region27: #{cl_for_fact_forward.1} parent=1 // pred_check_branch
      %36 = sbr.rel (0) target = $region29
    $region28: #{cl_for_fact_forward.1} parent=1 // pred_region
      _
    $region29: #{cl_for_fact_forward.1} parent=1 // pred_fallthru
      _
    // Predicated region
    $region30: #{cl_for_fact_forward.1} parent=1 // pred_check
      _
    $region31: #{cl_for_fact_forward.1} parent=1 // pred_check_branch
      %38 = sbr.rel (0) target = $region33
    $region32: #{cl_for_fact_forward.1} parent=1 // pred_region
      %39 = dma.done [#allocation3], 8192
    $region33: #{cl_for_fact_forward.1} parent=1 // pred_fallthru
      _
    %v41 = vld [vmem:[%s0] ss:$2 sm:$0xff]
    %s42 = scalar_lea.vmem %s0, 1
    %v43 = vld [vmem:[%s42] ss:$2 sm:$0xff]
    %v44 = vld [vmem:[%s1] ss:$2 sm:$0xff]
    %s45 = scalar_lea.vmem %s1, 1
    %v46 = vld [vmem:[%s45] ss:$2 sm:$0xff]
    %v47 = vld [vmem:[%s2] sm:$0xff]
    %v48 = vpack.c.bf16 %v43, %v41
    %v49 = vld [vmem:[#allocation2] sm:$0xff]
    %v50 = vld [vmem:[#allocation2 + $0x8] sm:$0xff]
    %v51 = vld [vmem:[#allocation2 + $0x10] sm:$0xff]
    %v52 = vld [vmem:[#allocation2 + $0x18] sm:$0xff]
    %v53 = vld [vmem:[#allocation2 + $0x20] sm:$0xff]
    %v54 = vld [vmem:[#allocation2 + $0x28] sm:$0xff]
    %v55 = vld [vmem:[#allocation2 + $0x30] sm:$0xff]
    %v56 = vld [vmem:[#allocation2 + $0x38] sm:$0xff]
    %v57 = vld [vmem:[#allocation2 + $0x40] sm:$0xff]
    %v58 = vld [vmem:[#allocation2 + $0x48] sm:$0xff]
    %v59 = vld [vmem:[#allocation2 + $0x50] sm:$0xff]
    %v60 = vld [vmem:[#allocation2 + $0x58] sm:$0xff]
    %v61 = vld [vmem:[#allocation2 + $0x60] sm:$0xff]
    %v62 = vld [vmem:[#allocation2 + $0x68] sm:$0xff]
    %v63 = vld [vmem:[#allocation2 + $0x70] sm:$0xff]
    %v64 = vld [vmem:[#allocation2 + $0x78] sm:$0xff]
    %v65 = vld [vmem:[%s6] sm:$0x3]
    %v67 = vlaneseq
    %v68 = vshrl.u32 %v67, 7
    %v69 = vsub.s32 0, %v68
    %v70 = vrot.slane %v65, %v69
    %v71 = vlaneseq
    %v72 = vshrl.u32 %v71, 7
    %v73 = vsub.s32 1, %v72
    %v74 = vrot.slane %v65, %v73
    %v93 = vunpack.c.l.b16 %v49
    %v94 = vunpack.c.h.b16 %v49
    %v95 = vunpack.c.l.b16 %v50
    %v96 = vunpack.c.h.b16 %v50
    %v97 = vunpack.c.l.b16 %v51
    %v98 = vunpack.c.h.b16 %v51
    %v99 = vunpack.c.l.b16 %v52
    %v100 = vunpack.c.h.b16 %v52
    %v101 = vunpack.c.l.b16 %v53
    %v102 = vunpack.c.h.b16 %v53
    %v103 = vunpack.c.l.b16 %v54
    %v104 = vunpack.c.h.b16 %v54
    %v105 = vunpack.c.l.b16 %v55
    %v106 = vunpack.c.h.b16 %v55
    %v107 = vunpack.c.l.b16 %v56
    %v108 = vunpack.c.h.b16 %v56
    %v109 = vunpack.c.l.b16 %v57
    %v110 = vunpack.c.h.b16 %v57
    %v111 = vunpack.c.l.b16 %v58
    %v112 = vunpack.c.h.b16 %v58
    %v113 = vunpack.c.l.b16 %v59
    %v114 = vunpack.c.h.b16 %v59
    %v115 = vunpack.c.l.b16 %v60
    %v116 = vunpack.c.h.b16 %v60
    %v117 = vunpack.c.l.b16 %v61
    %v118 = vunpack.c.h.b16 %v61
    %v119 = vunpack.c.l.b16 %v62
    %v120 = vunpack.c.h.b16 %v62
    %v121 = vunpack.c.l.b16 %v63
    %v122 = vunpack.c.h.b16 %v63
    %v123 = vunpack.c.l.b16 %v64
    %v124 = vunpack.c.h.b16 %v64
    %v125 = vpack.c.b16 %v95, %v93
    %v126 = vpack.c.b16 %v96, %v94
    %v127 = vpack.c.b16 %v99, %v97
    %v128 = vpack.c.b16 %v100, %v98
    %v129 = vpack.c.b16 %v103, %v101
    %v130 = vpack.c.b16 %v104, %v102
    %v131 = vpack.c.b16 %v107, %v105
    %v132 = vpack.c.b16 %v108, %v106
    %v133 = vpack.c.b16 %v111, %v109
    %v134 = vpack.c.b16 %v112, %v110
    %v135 = vpack.c.b16 %v115, %v113
    %v136 = vpack.c.b16 %v116, %v114
    %v137 = vpack.c.b16 %v119, %v117
    %v138 = vpack.c.b16 %v120, %v118
    %v139 = vpack.c.b16 %v123, %v121
    %v140 = vpack.c.b16 %v124, %v122
    %157 = vmatprep.subr.bf16.mxu0 %v140
    %158 = vmatpush1.bf16.msra.mxu0 %v139
    %159 = vmatprep.subr.bf16.mxu0 %v138
    %160 = vmatpush1.bf16.msra.mxu0 %v137
    %161 = vmatprep.subr.bf16.mxu0 %v136
    %162 = vmatpush1.bf16.msra.mxu0 %v135
    %163 = vmatprep.subr.bf16.mxu0 %v134
    %164 = vmatpush1.bf16.msra.mxu0 %v133
    %165 = vmatprep.subr.bf16.mxu0 %v132
    %166 = vmatpush1.bf16.msra.mxu0 %v131
    %167 = vmatprep.subr.bf16.mxu0 %v130
    %168 = vmatpush1.bf16.msra.mxu0 %v129
    %169 = vmatprep.subr.bf16.mxu0 %v128
    %170 = vmatpush1.bf16.msra.mxu0 %v127
    %171 = vmatprep.subr.bf16.mxu0 %v126
    %172 = vmatpush1.bf16.msra.mxu0 %v125
    %173 = vmatprep.subr.bf16.mxu0 0
    %174 = vmatpush2.bf16.msra.mxu0 0
    %175 = vmatprep.subr.bf16.mxu0 0
    %176 = vmatpush2.bf16.msra.mxu0 0
    %177 = vmatprep.subr.bf16.mxu0 0
    %178 = vmatpush2.bf16.msra.mxu0 0
    %179 = vmatprep.subr.bf16.mxu0 0
    %180 = vmatpush2.bf16.msra.mxu0 0
    %181 = vmatprep.subr.bf16.mxu0 0
    %182 = vmatpush2.bf16.msra.mxu0 0
    %183 = vmatprep.subr.bf16.mxu0 0
    %184 = vmatpush2.bf16.msra.mxu0 0
    %185 = vmatprep.subr.bf16.mxu0 0
    %186 = vmatpush2.bf16.msra.mxu0 0
    %187 = vmatprep.subr.bf16.mxu0 0
    %188 = vmatpush2.bf16.msra.mxu0 0
    %189 = vmatprep.mubr.bf16.mxu0 0
    %190 = vmatmul.mubr.bf16.gmra.mxu0 %v48
    %v191 = vpop.f32.mrf.mxu0
    %v192 = vadd.f32 %v70, %v191
    %v193 = vpop.f32.mrf.mxu0
    %v194 = vadd.f32 %v74, %v193
    %v195 = vpop.f32.mrf.mxu0
    %v196 = vadd.f32 %v70, %v195
    %v197 = vpop.f32.mrf.mxu0
    %v198 = vadd.f32 %v74, %v197
    %199 = vdwg.mxu0
    %v200 = vxor.u32 %v192, 2147483648
    %v201 = vxor.u32 %v196, 2147483648
    %v202 = vmul.f32 %v200, 1.442695
    %v203 = vpow.pop %v202
    %v204 = vmul.f32 %v201, 1.442695
    %v205 = vpow.pop %v204
    %v206 = vadd.f32 %v203, 1.0
    %v207 = vadd.f32 %v205, 1.0
    %v208 = vrcp.pop %v206
    %v209 = vmul.f32 1.0, %v208
    %v210 = vrcp.pop %v207
    %v211 = vmul.f32 1.0, %v210
    %v212 = vmax.f32 %v194, 0.0
    %v213 = vmax.f32 %v198, 0.0
    %v214 = vmul.f32 %v209, %v212
    %v215 = vmul.f32 %v211, %v213
    %v216 = vsub.f32 1.0, %v209
    %v217 = vsub.f32 1.0, %v211
    %v218 = vmul.f32 %v216, %v41
    %v219 = vmul.f32 %v217, %v43
    %v220 = vadd.f32 %v214, %v218
    %v221 = vadd.f32 %v215, %v219
    %v222 = vpack.c.bf16 %v221, %v220
    %s223 = scalar_lea.vmem [#allocation2], 128
    %v224 = vld [vmem:[%s223] sm:$0xff]
    %v225 = vld [vmem:[%s223 + $0x8] sm:$0xff]
    %v226 = vld [vmem:[%s223 + $0x10] sm:$0xff]
    %v227 = vld [vmem:[%s223 + $0x18] sm:$0xff]
    %v228 = vld [vmem:[%s223 + $0x20] sm:$0xff]
    %v229 = vld [vmem:[%s223 + $0x28] sm:$0xff]
    %v230 = vld [vmem:[%s223 + $0x30] sm:$0xff]
    %v231 = vld [vmem:[%s223 + $0x38] sm:$0xff]
    %v232 = vld [vmem:[%s223 + $0x40] sm:$0xff]
    %v233 = vld [vmem:[%s223 + $0x48] sm:$0xff]
    %v234 = vld [vmem:[%s223 + $0x50] sm:$0xff]
    %v235 = vld [vmem:[%s223 + $0x58] sm:$0xff]
    %v236 = vld [vmem:[%s223 + $0x60] sm:$0xff]
    %v237 = vld [vmem:[%s223 + $0x68] sm:$0xff]
    %v238 = vld [vmem:[%s223 + $0x70] sm:$0xff]
    %v239 = vld [vmem:[%s223 + $0x78] sm:$0xff]
    %s240 = scalar_lea.vmem %s6, 2
    %v241 = vld [vmem:[%s240] sm:$0x3]
    %v243 = vlaneseq
    %v244 = vshrl.u32 %v243, 7
    %v245 = vsub.s32 0, %v244
    %v246 = vrot.slane %v241, %v245
    %v247 = vlaneseq
    %v248 = vshrl.u32 %v247, 7
    %v249 = vsub.s32 1, %v248
    %v250 = vrot.slane %v241, %v249
    %v269 = vunpack.c.l.b16 %v224
    %v270 = vunpack.c.h.b16 %v224
    %v271 = vunpack.c.l.b16 %v225
    %v272 = vunpack.c.h.b16 %v225
    %v273 = vunpack.c.l.b16 %v226
    %v274 = vunpack.c.h.b16 %v226
    %v275 = vunpack.c.l.b16 %v227
    %v276 = vunpack.c.h.b16 %v227
    %v277 = vunpack.c.l.b16 %v228
    %v278 = vunpack.c.h.b16 %v228
    %v279 = vunpack.c.l.b16 %v229
    %v280 = vunpack.c.h.b16 %v229
    %v281 = vunpack.c.l.b16 %v230
    %v282 = vunpack.c.h.b16 %v230
    %v283 = vunpack.c.l.b16 %v231
    %v284 = vunpack.c.h.b16 %v231
    %v285 = vunpack.c.l.b16 %v232
    %v286 = vunpack.c.h.b16 %v232
    %v287 = vunpack.c.l.b16 %v233
    %v288 = vunpack.c.h.b16 %v233
    %v289 = vunpack.c.l.b16 %v234
    %v290 = vunpack.c.h.b16 %v234
    %v291 = vunpack.c.l.b16 %v235
    %v292 = vunpack.c.h.b16 %v235
    %v293 = vunpack.c.l.b16 %v236
    %v294 = vunpack.c.h.b16 %v236
    %v295 = vunpack.c.l.b16 %v237
    %v296 = vunpack.c.h.b16 %v237
    %v297 = vunpack.c.l.b16 %v238
    %v298 = vunpack.c.h.b16 %v238
    %v299 = vunpack.c.l.b16 %v239
    %v300 = vunpack.c.h.b16 %v239
    %v301 = vpack.c.b16 %v271, %v269
    %v302 = vpack.c.b16 %v272, %v270
    %v303 = vpack.c.b16 %v275, %v273
    %v304 = vpack.c.b16 %v276, %v274
    %v305 = vpack.c.b16 %v279, %v277
    %v306 = vpack.c.b16 %v280, %v278
    %v307 = vpack.c.b16 %v283, %v281
    %v308 = vpack.c.b16 %v284, %v282
    %v309 = vpack.c.b16 %v287, %v285
    %v310 = vpack.c.b16 %v288, %v286
    %v311 = vpack.c.b16 %v291, %v289
    %v312 = vpack.c.b16 %v292, %v290
    %v313 = vpack.c.b16 %v295, %v293
    %v314 = vpack.c.b16 %v296, %v294
    %v315 = vpack.c.b16 %v299, %v297
    %v316 = vpack.c.b16 %v300, %v298
    %333 = vmatprep.subr.bf16.mxu0 %v316
    %334 = vmatpush1.bf16.msra.mxu0 %v315
    %335 = vmatprep.subr.bf16.mxu0 %v314
    %336 = vmatpush1.bf16.msra.mxu0 %v313
    %337 = vmatprep.subr.bf16.mxu0 %v312
    %338 = vmatpush1.bf16.msra.mxu0 %v311
    %339 = vmatprep.subr.bf16.mxu0 %v310
    %340 = vmatpush1.bf16.msra.mxu0 %v309
    %341 = vmatprep.subr.bf16.mxu0 %v308
    %342 = vmatpush1.bf16.msra.mxu0 %v307
    %343 = vmatprep.subr.bf16.mxu0 %v306
    %344 = vmatpush1.bf16.msra.mxu0 %v305
    %345 = vmatprep.subr.bf16.mxu0 %v304
    %346 = vmatpush1.bf16.msra.mxu0 %v303
    %347 = vmatprep.subr.bf16.mxu0 %v302
    %348 = vmatpush1.bf16.msra.mxu0 %v301
    %349 = vmatprep.subr.bf16.mxu0 0
    %350 = vmatpush2.bf16.msra.mxu0 0
    %351 = vmatprep.subr.bf16.mxu0 0
    %352 = vmatpush2.bf16.msra.mxu0 0
    %353 = vmatprep.subr.bf16.mxu0 0
    %354 = vmatpush2.bf16.msra.mxu0 0
    %355 = vmatprep.subr.bf16.mxu0 0
    %356 = vmatpush2.bf16.msra.mxu0 0
    %357 = vmatprep.subr.bf16.mxu0 0
    %358 = vmatpush2.bf16.msra.mxu0 0
    %359 = vmatprep.subr.bf16.mxu0 0
    %360 = vmatpush2.bf16.msra.mxu0 0
    %361 = vmatprep.subr.bf16.mxu0 0
    %362 = vmatpush2.bf16.msra.mxu0 0
    %363 = vmatprep.subr.bf16.mxu0 0
    %364 = vmatpush2.bf16.msra.mxu0 0
    %365 = vmatprep.mubr.bf16.mxu0 0
    %366 = vmatmul.mubr.bf16.gmra.mxu0 %v222
    %v367 = vpop.f32.mrf.mxu0
    %v368 = vadd.f32 %v246, %v367
    %v369 = vpop.f32.mrf.mxu0
    %v370 = vadd.f32 %v250, %v369
    %v371 = vpop.f32.mrf.mxu0
    %v372 = vadd.f32 %v246, %v371
    %v373 = vpop.f32.mrf.mxu0
    %v374 = vadd.f32 %v250, %v373
    %375 = vdwg.mxu0
    %v376 = vxor.u32 %v368, 2147483648
    %v377 = vxor.u32 %v372, 2147483648
    %v378 = vmul.f32 %v376, 1.442695
    %v379 = vpow.pop %v378
    %v380 = vmul.f32 %v377, 1.442695
    %v381 = vpow.pop %v380
    %v382 = vadd.f32 %v379, 1.0
    %v383 = vadd.f32 %v381, 1.0
    %v384 = vrcp.pop %v382
    %v385 = vmul.f32 1.0, %v384
    %v386 = vrcp.pop %v383
    %v387 = vmul.f32 1.0, %v386
    %v388 = vmax.f32 %v370, 0.0
    %v389 = vmax.f32 %v374, 0.0
    %v390 = vmul.f32 %v385, %v388
    %v391 = vmul.f32 %v387, %v389
    %v392 = vsub.f32 1.0, %v385
    %v393 = vsub.f32 1.0, %v387
    %v394 = vmul.f32 %v392, %v220
    %v395 = vmul.f32 %v393, %v221
    %v396 = vadd.f32 %v390, %v394
    %v397 = vadd.f32 %v391, %v395
    %v398 = vpack.c.bf16 %v397, %v396
    %v399 = vld [vmem:[%s5] sm:$0xf]
    %v400 = vld [vmem:[%s5 + $0x4] sm:$0xf]
    %v401 = vld [vmem:[%s5 + $0x8] sm:$0xf]
    %v402 = vld [vmem:[%s5 + $0xc] sm:$0xf]
    %v403 = vld [vmem:[%s5 + $0x10] sm:$0xf]
    %v404 = vld [vmem:[%s5 + $0x14] sm:$0xf]
    %v405 = vld [vmem:[%s5 + $0x18] sm:$0xf]
    %v406 = vld [vmem:[%s5 + $0x1c] sm:$0xf]
    %v407 = vld [vmem:[%s5 + $0x20] sm:$0xf]
    %v408 = vld [vmem:[%s5 + $0x24] sm:$0xf]
    %v409 = vld [vmem:[%s5 + $0x28] sm:$0xf]
    %v410 = vld [vmem:[%s5 + $0x2c] sm:$0xf]
    %v411 = vld [vmem:[%s5 + $0x30] sm:$0xf]
    %v412 = vld [vmem:[%s5 + $0x34] sm:$0xf]
    %v413 = vld [vmem:[%s5 + $0x38] sm:$0xf]
    %v414 = vld [vmem:[%s5 + $0x3c] sm:$0xf]
    %s415 = scalar_lea.vmem %s6, 4
    %v416 = vld [vmem:[%s415] sm:$0x3]
    %v418 = vlaneseq
    %v419 = vshrl.u32 %v418, 7
    %v420 = vsub.s32 0, %v419
    %v421 = vrot.slane %v416, %v420
    %v439 = vunpack.c.l.b16 %v399
    %v440 = vunpack.c.l.b16 %v400
    %v441 = vunpack.c.l.b16 %v401
    %v442 = vunpack.c.l.b16 %v402
    %v443 = vunpack.c.l.b16 %v403
    %v444 = vunpack.c.l.b16 %v404
    %v445 = vunpack.c.l.b16 %v405
    %v446 = vunpack.c.l.b16 %v406
    %v447 = vunpack.c.l.b16 %v407
    %v448 = vunpack.c.l.b16 %v408
    %v449 = vunpack.c.l.b16 %v409
    %v450 = vunpack.c.l.b16 %v410
    %v451 = vunpack.c.l.b16 %v411
    %v452 = vunpack.c.l.b16 %v412
    %v453 = vunpack.c.l.b16 %v413
    %v454 = vunpack.c.l.b16 %v414
    %v455 = vpack.c.b16 %v440, %v439
    %v456 = vpack.c.b16 %v442, %v441
    %v457 = vpack.c.b16 %v444, %v443
    %v458 = vpack.c.b16 %v446, %v445
    %v459 = vpack.c.b16 %v448, %v447
    %v460 = vpack.c.b16 %v450, %v449
    %v461 = vpack.c.b16 %v452, %v451
    %v462 = vpack.c.b16 %v454, %v453
    %471 = vmatprep.subr.bf16.mxu0 0
    %472 = vmatpush1.bf16.msra.mxu0 %v462
    %473 = vmatprep.subr.bf16.mxu0 0
    %474 = vmatpush1.bf16.msra.mxu0 %v461
    %475 = vmatprep.subr.bf16.mxu0 0
    %476 = vmatpush1.bf16.msra.mxu0 %v460
    %477 = vmatprep.subr.bf16.mxu0 0
    %478 = vmatpush1.bf16.msra.mxu0 %v459
    %479 = vmatprep.subr.bf16.mxu0 0
    %480 = vmatpush1.bf16.msra.mxu0 %v458
    %481 = vmatprep.subr.bf16.mxu0 0
    %482 = vmatpush1.bf16.msra.mxu0 %v457
    %483 = vmatprep.subr.bf16.mxu0 0
    %484 = vmatpush1.bf16.msra.mxu0 %v456
    %485 = vmatprep.subr.bf16.mxu0 0
    %486 = vmatpush1.bf16.msra.mxu0 %v455
    %487 = vmatprep.subr.bf16.mxu0 0
    %488 = vmatpush2.bf16.msra.mxu0 0
    %489 = vmatprep.subr.bf16.mxu0 0
    %490 = vmatpush2.bf16.msra.mxu0 0
    %491 = vmatprep.subr.bf16.mxu0 0
    %492 = vmatpush2.bf16.msra.mxu0 0
    %493 = vmatprep.subr.bf16.mxu0 0
    %494 = vmatpush2.bf16.msra.mxu0 0
    %495 = vmatprep.subr.bf16.mxu0 0
    %496 = vmatpush2.bf16.msra.mxu0 0
    %497 = vmatprep.subr.bf16.mxu0 0
    %498 = vmatpush2.bf16.msra.mxu0 0
    %499 = vmatprep.subr.bf16.mxu0 0
    %500 = vmatpush2.bf16.msra.mxu0 0
    %501 = vmatprep.subr.bf16.mxu0 0
    %502 = vmatpush2.bf16.msra.mxu0 0
    %503 = vmatprep.mubr.bf16.mxu0 0
    %504 = vmatmul.mubr.bf16.gmra.mxu0 %v398
    %v505 = vpop.f32.mrf.mxu0
    %v506 = vadd.f32 %v421, %v505
    %v507 = vpop.f32.mrf.mxu0
    %v508 = vpop.f32.mrf.mxu0
    %v509 = vadd.f32 %v421, %v508
    %v510 = vpop.f32.mrf.mxu0
    %511 = vdwg.mxu0
    %v512 = vmul.f32 %v506, %v506
    %v513 = vmul.f32 %v509, %v509
    %vm514 = vcmask 523264
    %v515 = vsel %vm514, %v512, 0.0
    %516 = vadd.xlane.f32.xlu0 %v515
    %v517 = vpop.xlane.xlu0 %516
    %v518 = vsel %vm514, %v513, 0.0
    %519 = vadd.xlane.f32.xlu0 %v518
    %v520 = vpop.xlane.xlu0 %519
    %v521 = vmax.f32 %v517, 1e-16
    %v522 = vmax.f32 %v520, 1e-16
    %v523 = vrsqrt.pop %v521
    %v524 = vrsqrt.pop %v522
    %v525 = vmul.f32 %v506, %v523
    %v526 = vmul.f32 %v509, %v524
    %v527 = vpack.c.bf16 %v46, %v44
    %v528 = vpack.c.bf16 %v47, %v47
    %s529 = scalar_lea.vmem [#allocation2], 256
    %v530 = vld [vmem:[%s529] sm:$0xff]
    %v531 = vld [vmem:[%s529 + $0x8] sm:$0xff]
    %v532 = vld [vmem:[%s529 + $0x10] sm:$0xff]
    %v533 = vld [vmem:[%s529 + $0x18] sm:$0xff]
    %v534 = vld [vmem:[%s529 + $0x20] sm:$0xff]
    %v535 = vld [vmem:[%s529 + $0x28] sm:$0xff]
    %v536 = vld [vmem:[%s529 + $0x30] sm:$0xff]
    %v537 = vld [vmem:[%s529 + $0x38] sm:$0xff]
    %v538 = vld [vmem:[%s529 + $0x40] sm:$0xff]
    %v539 = vld [vmem:[%s529 + $0x48] sm:$0xff]
    %v540 = vld [vmem:[%s529 + $0x50] sm:$0xff]
    %v541 = vld [vmem:[%s529 + $0x58] sm:$0xff]
    %v542 = vld [vmem:[%s529 + $0x60] sm:$0xff]
    %v543 = vld [vmem:[%s529 + $0x68] sm:$0xff]
    %v544 = vld [vmem:[%s529 + $0x70] sm:$0xff]
    %v545 = vld [vmem:[%s529 + $0x78] sm:$0xff]
    %s546 = scalar_lea.vmem %s6, 6
    %v547 = vld [vmem:[%s546] sm:$0x3]
    %v549 = vlaneseq
    %v550 = vshrl.u32 %v549, 7
    %v551 = vsub.s32 0, %v550
    %v552 = vrot.slane %v547, %v551
    %v553 = vlaneseq
    %v554 = vshrl.u32 %v553, 7
    %v555 = vsub.s32 1, %v554
    %v556 = vrot.slane %v547, %v555
    %v575 = vunpack.c.l.b16 %v530
    %v576 = vunpack.c.h.b16 %v530
    %v577 = vunpack.c.l.b16 %v531
    %v578 = vunpack.c.h.b16 %v531
    %v579 = vunpack.c.l.b16 %v532
    %v580 = vunpack.c.h.b16 %v532
    %v581 = vunpack.c.l.b16 %v533
    %v582 = vunpack.c.h.b16 %v533
    %v583 = vunpack.c.l.b16 %v534
    %v584 = vunpack.c.h.b16 %v534
    %v585 = vunpack.c.l.b16 %v535
    %v586 = vunpack.c.h.b16 %v535
    %v587 = vunpack.c.l.b16 %v536
    %v588 = vunpack.c.h.b16 %v536
    %v589 = vunpack.c.l.b16 %v537
    %v590 = vunpack.c.h.b16 %v537
    %v591 = vunpack.c.l.b16 %v538
    %v592 = vunpack.c.h.b16 %v538
    %v593 = vunpack.c.l.b16 %v539
    %v594 = vunpack.c.h.b16 %v539
    %v595 = vunpack.c.l.b16 %v540
    %v596 = vunpack.c.h.b16 %v540
    %v597 = vunpack.c.l.b16 %v541
    %v598 = vunpack.c.h.b16 %v541
    %v599 = vunpack.c.l.b16 %v542
    %v600 = vunpack.c.h.b16 %v542
    %v601 = vunpack.c.l.b16 %v543
    %v602 = vunpack.c.h.b16 %v543
    %v603 = vunpack.c.l.b16 %v544
    %v604 = vunpack.c.h.b16 %v544
    %v605 = vunpack.c.l.b16 %v545
    %v606 = vunpack.c.h.b16 %v545
    %v607 = vpack.c.b16 %v577, %v575
    %v608 = vpack.c.b16 %v578, %v576
    %v609 = vpack.c.b16 %v581, %v579
    %v610 = vpack.c.b16 %v582, %v580
    %v611 = vpack.c.b16 %v585, %v583
    %v612 = vpack.c.b16 %v586, %v584
    %v613 = vpack.c.b16 %v589, %v587
    %v614 = vpack.c.b16 %v590, %v588
    %v615 = vpack.c.b16 %v593, %v591
    %v616 = vpack.c.b16 %v594, %v592
    %v617 = vpack.c.b16 %v597, %v595
    %v618 = vpack.c.b16 %v598, %v596
    %v619 = vpack.c.b16 %v601, %v599
    %v620 = vpack.c.b16 %v602, %v600
    %v621 = vpack.c.b16 %v605, %v603
    %v622 = vpack.c.b16 %v606, %v604
    %639 = vmatprep.subr.bf16.mxu0 %v622
    %640 = vmatpush1.bf16.msra.mxu0 %v621
    %641 = vmatprep.subr.bf16.mxu0 %v620
    %642 = vmatpush1.bf16.msra.mxu0 %v619
    %643 = vmatprep.subr.bf16.mxu0 %v618
    %644 = vmatpush1.bf16.msra.mxu0 %v617
    %645 = vmatprep.subr.bf16.mxu0 %v616
    %646 = vmatpush1.bf16.msra.mxu0 %v615
    %647 = vmatprep.subr.bf16.mxu0 %v614
    %648 = vmatpush1.bf16.msra.mxu0 %v613
    %649 = vmatprep.subr.bf16.mxu0 %v612
    %650 = vmatpush1.bf16.msra.mxu0 %v611
    %651 = vmatprep.subr.bf16.mxu0 %v610
    %652 = vmatpush1.bf16.msra.mxu0 %v609
    %653 = vmatprep.subr.bf16.mxu0 %v608
    %654 = vmatpush1.bf16.msra.mxu0 %v607
    %655 = vmatprep.subr.bf16.mxu0 0
    %656 = vmatpush2.bf16.msra.mxu0 0
    %657 = vmatprep.subr.bf16.mxu0 0
    %658 = vmatpush2.bf16.msra.mxu0 0
    %659 = vmatprep.subr.bf16.mxu0 0
    %660 = vmatpush2.bf16.msra.mxu0 0
    %661 = vmatprep.subr.bf16.mxu0 0
    %662 = vmatpush2.bf16.msra.mxu0 0
    %663 = vmatprep.subr.bf16.mxu0 0
    %664 = vmatpush2.bf16.msra.mxu0 0
    %665 = vmatprep.subr.bf16.mxu0 0
    %666 = vmatpush2.bf16.msra.mxu0 0
    %667 = vmatprep.subr.bf16.mxu0 0
    %668 = vmatpush2.bf16.msra.mxu0 0
    %669 = vmatprep.subr.bf16.mxu0 0
    %670 = vmatpush2.bf16.msra.mxu0 0
    %671 = vmatprep.mubr.bf16.mxu0 0
    %672 = vmatmul.mubr.bf16.gmra.mxu0 %v527
    %v673 = vpop.f32.mrf.mxu0
    %v674 = vadd.f32 %v552, %v673
    %v675 = vpop.f32.mrf.mxu0
    %v676 = vadd.f32 %v556, %v675
    %v677 = vpop.f32.mrf.mxu0
    %v678 = vadd.f32 %v552, %v677
    %v679 = vpop.f32.mrf.mxu0
    %v680 = vadd.f32 %v556, %v679
    %681 = vmatprep.mubr.bf16.mxu0 0
    %682 = vmatmul.mubr.bf16.gmra.mxu0 %v528
    %v683 = vpop.f32.mrf.mxu0
    %v684 = vadd.f32 %v552, %v683
    %v685 = vpop.f32.mrf.mxu0
    %v686 = vadd.f32 %v556, %v685
    %v687 = vpop.f32.mrf.mxu0
    %v688 = vpop.f32.mrf.mxu0
    %689 = vdwg.mxu0
    %v690 = vxor.u32 %v674, 2147483648
    %v691 = vxor.u32 %v678, 2147483648
    %v692 = vxor.u32 %v684, 2147483648
    %v693 = vmul.f32 %v690, 1.442695
    %v694 = vpow.pop %v693
    %v695 = vmul.f32 %v691, 1.442695
    %v696 = vpow.pop %v695
    %v697 = vmul.f32 %v692, 1.442695
    %v698 = vpow.pop %v697
    %v699 = vadd.f32 %v694, 1.0
    %v700 = vadd.f32 %v696, 1.0
    %v701 = vadd.f32 %v698, 1.0
    %v702 = vrcp.pop %v699
    %v703 = vmul.f32 1.0, %v702
    %v704 = vrcp.pop %v700
    %v705 = vmul.f32 1.0, %v704
    %v706 = vrcp.pop %v701
    %v707 = vmul.f32 1.0, %v706
    %v708 = vmax.f32 %v676, 0.0
    %v709 = vmax.f32 %v680, 0.0
    %v710 = vmax.f32 %v686, 0.0
    %v711 = vmul.f32 %v703, %v708
    %v712 = vmul.f32 %v705, %v709
    %v713 = vmul.f32 %v707, %v710
    %v714 = vsub.f32 1.0, %v703
    %v715 = vsub.f32 1.0, %v705
    %v716 = vsub.f32 1.0, %v707
    %v717 = vmul.f32 %v714, %v44
    %v718 = vmul.f32 %v715, %v46
    %v719 = vmul.f32 %v716, %v47
    %v720 = vadd.f32 %v711, %v717
    %v721 = vadd.f32 %v712, %v718
    %v722 = vadd.f32 %v713, %v719
    %v723 = vpack.c.bf16 %v721, %v720
    %v724 = vpack.c.bf16 %v722, %v722
    %s725 = scalar_lea.vmem [#allocation2], 384
    %v726 = vld [vmem:[%s725] sm:$0xff]
    %v727 = vld [vmem:[%s725 + $0x8] sm:$0xff]
    %v728 = vld [vmem:[%s725 + $0x10] sm:$0xff]
    %v729 = vld [vmem:[%s725 + $0x18] sm:$0xff]
    %v730 = vld [vmem:[%s725 + $0x20] sm:$0xff]
    %v731 = vld [vmem:[%s725 + $0x28] sm:$0xff]
    %v732 = vld [vmem:[%s725 + $0x30] sm:$0xff]
    %v733 = vld [vmem:[%s725 + $0x38] sm:$0xff]
    %v734 = vld [vmem:[%s725 + $0x40] sm:$0xff]
    %v735 = vld [vmem:[%s725 + $0x48] sm:$0xff]
    %v736 = vld [vmem:[%s725 + $0x50] sm:$0xff]
    %v737 = vld [vmem:[%s725 + $0x58] sm:$0xff]
    %v738 = vld [vmem:[%s725 + $0x60] sm:$0xff]
    %v739 = vld [vmem:[%s725 + $0x68] sm:$0xff]
    %v740 = vld [vmem:[%s725 + $0x70] sm:$0xff]
    %v741 = vld [vmem:[%s725 + $0x78] sm:$0xff]
    %s742 = scalar_lea.vmem %s6, 8
    %v743 = vld [vmem:[%s742] sm:$0x3]
    %v745 = vlaneseq
    %v746 = vshrl.u32 %v745, 7
    %v747 = vsub.s32 0, %v746
    %v748 = vrot.slane %v743, %v747
    %v749 = vlaneseq
    %v750 = vshrl.u32 %v749, 7
    %v751 = vsub.s32 1, %v750
    %v752 = vrot.slane %v743, %v751
    %v771 = vunpack.c.l.b16 %v726
    %v772 = vunpack.c.h.b16 %v726
    %v773 = vunpack.c.l.b16 %v727
    %v774 = vunpack.c.h.b16 %v727
    %v775 = vunpack.c.l.b16 %v728
    %v776 = vunpack.c.h.b16 %v728
    %v777 = vunpack.c.l.b16 %v729
    %v778 = vunpack.c.h.b16 %v729
    %v779 = vunpack.c.l.b16 %v730
    %v780 = vunpack.c.h.b16 %v730
    %v781 = vunpack.c.l.b16 %v731
    %v782 = vunpack.c.h.b16 %v731
    %v783 = vunpack.c.l.b16 %v732
    %v784 = vunpack.c.h.b16 %v732
    %v785 = vunpack.c.l.b16 %v733
    %v786 = vunpack.c.h.b16 %v733
    %v787 = vunpack.c.l.b16 %v734
    %v788 = vunpack.c.h.b16 %v734
    %v789 = vunpack.c.l.b16 %v735
    %v790 = vunpack.c.h.b16 %v735
    %v791 = vunpack.c.l.b16 %v736
    %v792 = vunpack.c.h.b16 %v736
    %v793 = vunpack.c.l.b16 %v737
    %v794 = vunpack.c.h.b16 %v737
    %v795 = vunpack.c.l.b16 %v738
    %v796 = vunpack.c.h.b16 %v738
    %v797 = vunpack.c.l.b16 %v739
    %v798 = vunpack.c.h.b16 %v739
    %v799 = vunpack.c.l.b16 %v740
    %v800 = vunpack.c.h.b16 %v740
    %v801 = vunpack.c.l.b16 %v741
    %v802 = vunpack.c.h.b16 %v741
    %v803 = vpack.c.b16 %v773, %v771
    %v804 = vpack.c.b16 %v774, %v772
    %v805 = vpack.c.b16 %v777, %v775
    %v806 = vpack.c.b16 %v778, %v776
    %v807 = vpack.c.b16 %v781, %v779
    %v808 = vpack.c.b16 %v782, %v780
    %v809 = vpack.c.b16 %v785, %v783
    %v810 = vpack.c.b16 %v786, %v784
    %v811 = vpack.c.b16 %v789, %v787
    %v812 = vpack.c.b16 %v790, %v788
    %v813 = vpack.c.b16 %v793, %v791
    %v814 = vpack.c.b16 %v794, %v792
    %v815 = vpack.c.b16 %v797, %v795
    %v816 = vpack.c.b16 %v798, %v796
    %v817 = vpack.c.b16 %v801, %v799
    %v818 = vpack.c.b16 %v802, %v800
    %835 = vmatprep.subr.bf16.mxu0 %v818
    %836 = vmatpush1.bf16.msra.mxu0 %v817
    %837 = vmatprep.subr.bf16.mxu0 %v816
    %838 = vmatpush1.bf16.msra.mxu0 %v815
    %839 = vmatprep.subr.bf16.mxu0 %v814
    %840 = vmatpush1.bf16.msra.mxu0 %v813
    %841 = vmatprep.subr.bf16.mxu0 %v812
    %842 = vmatpush1.bf16.msra.mxu0 %v811
    %843 = vmatprep.subr.bf16.mxu0 %v810
    %844 = vmatpush1.bf16.msra.mxu0 %v809
    %845 = vmatprep.subr.bf16.mxu0 %v808
    %846 = vmatpush1.bf16.msra.mxu0 %v807
    %847 = vmatprep.subr.bf16.mxu0 %v806
    %848 = vmatpush1.bf16.msra.mxu0 %v805
    %849 = vmatprep.subr.bf16.mxu0 %v804
    %850 = vmatpush1.bf16.msra.mxu0 %v803
    %851 = vmatprep.subr.bf16.mxu0 0
    %852 = vmatpush2.bf16.msra.mxu0 0
    %853 = vmatprep.subr.bf16.mxu0 0
    %854 = vmatpush2.bf16.msra.mxu0 0
    %855 = vmatprep.subr.bf16.mxu0 0
    %856 = vmatpush2.bf16.msra.mxu0 0
    %857 = vmatprep.subr.bf16.mxu0 0
    %858 = vmatpush2.bf16.msra.mxu0 0
    %859 = vmatprep.subr.bf16.mxu0 0
    %860 = vmatpush2.bf16.msra.mxu0 0
    %861 = vmatprep.subr.bf16.mxu0 0
    %862 = vmatpush2.bf16.msra.mxu0 0
    %863 = vmatprep.subr.bf16.mxu0 0
    %864 = vmatpush2.bf16.msra.mxu0 0
    %865 = vmatprep.subr.bf16.mxu0 0
    %866 = vmatpush2.bf16.msra.mxu0 0
    %867 = vmatprep.mubr.bf16.mxu0 0
    %868 = vmatmul.mubr.bf16.gmra.mxu0 %v723
    %v869 = vpop.f32.mrf.mxu0
    %v870 = vadd.f32 %v748, %v869
    %v871 = vpop.f32.mrf.mxu0
    %v872 = vadd.f32 %v752, %v871
    %v873 = vpop.f32.mrf.mxu0
    %v874 = vadd.f32 %v748, %v873
    %v875 = vpop.f32.mrf.mxu0
    %v876 = vadd.f32 %v752, %v875
    %877 = vmatprep.mubr.bf16.mxu0 0
    %878 = vmatmul.mubr.bf16.gmra.mxu0 %v724
    %v879 = vpop.f32.mrf.mxu0
    %v880 = vadd.f32 %v748, %v879
    %v881 = vpop.f32.mrf.mxu0
    %v882 = vadd.f32 %v752, %v881
    %v883 = vpop.f32.mrf.mxu0
    %v884 = vpop.f32.mrf.mxu0
    %885 = vdwg.mxu0
    %v886 = vxor.u32 %v870, 2147483648
    %v887 = vxor.u32 %v874, 2147483648
    %v888 = vxor.u32 %v880, 2147483648
    %v889 = vmul.f32 %v886, 1.442695
    %v890 = vpow.pop %v889
    %v891 = vmul.f32 %v887, 1.442695
    %v892 = vpow.pop %v891
    %v893 = vmul.f32 %v888, 1.442695
    %v894 = vpow.pop %v893
    %v895 = vadd.f32 %v890, 1.0
    %v896 = vadd.f32 %v892, 1.0
    %v897 = vadd.f32 %v894, 1.0
    %v898 = vrcp.pop %v895
    %v899 = vmul.f32 1.0, %v898
    %v900 = vrcp.pop %v896
    %v901 = vmul.f32 1.0, %v900
    %v902 = vrcp.pop %v897
    %v903 = vmul.f32 1.0, %v902
    %v904 = vmax.f32 %v872, 0.0
    %v905 = vmax.f32 %v876, 0.0
    %v906 = vmax.f32 %v882, 0.0
    %v907 = vmul.f32 %v899, %v904
    %v908 = vmul.f32 %v901, %v905
    %v909 = vmul.f32 %v903, %v906
    %v910 = vsub.f32 1.0, %v899
    %v911 = vsub.f32 1.0, %v901
    %v912 = vsub.f32 1.0, %v903
    %v913 = vmul.f32 %v910, %v720
    %v914 = vmul.f32 %v911, %v721
    %v915 = vmul.f32 %v912, %v722
    %v916 = vadd.f32 %v907, %v913
    %v917 = vadd.f32 %v908, %v914
    %v918 = vadd.f32 %v909, %v915
    %v919 = vpack.c.bf16 %v917, %v916
    %v920 = vpack.c.bf16 %v918, %v918
    %s921 = scalar_lea.vmem %s5, 64
    %v922 = vld [vmem:[%s921] sm:$0xf]
    %v923 = vld [vmem:[%s921 + $0x4] sm:$0xf]
    %v924 = vld [vmem:[%s921 + $0x8] sm:$0xf]
    %v925 = vld [vmem:[%s921 + $0xc] sm:$0xf]
    %v926 = vld [vmem:[%s921 + $0x10] sm:$0xf]
    %v927 = vld [vmem:[%s921 + $0x14] sm:$0xf]
    %v928 = vld [vmem:[%s921 + $0x18] sm:$0xf]
    %v929 = vld [vmem:[%s921 + $0x1c] sm:$0xf]
    %v930 = vld [vmem:[%s921 + $0x20] sm:$0xf]
    %v931 = vld [vmem:[%s921 + $0x24] sm:$0xf]
    %v932 = vld [vmem:[%s921 + $0x28] sm:$0xf]
    %v933 = vld [vmem:[%s921 + $0x2c] sm:$0xf]
    %v934 = vld [vmem:[%s921 + $0x30] sm:$0xf]
    %v935 = vld [vmem:[%s921 + $0x34] sm:$0xf]
    %v936 = vld [vmem:[%s921 + $0x38] sm:$0xf]
    %v937 = vld [vmem:[%s921 + $0x3c] sm:$0xf]
    %s938 = scalar_lea.vmem %s6, 10
    %v939 = vld [vmem:[%s938] sm:$0x3]
    %v941 = vlaneseq
    %v942 = vshrl.u32 %v941, 7
    %v943 = vsub.s32 0, %v942
    %v944 = vrot.slane %v939, %v943
    %v962 = vunpack.c.l.b16 %v922
    %v963 = vunpack.c.l.b16 %v923
    %v964 = vunpack.c.l.b16 %v924
    %v965 = vunpack.c.l.b16 %v925
    %v966 = vunpack.c.l.b16 %v926
    %v967 = vunpack.c.l.b16 %v927
    %v968 = vunpack.c.l.b16 %v928
    %v969 = vunpack.c.l.b16 %v929
    %v970 = vunpack.c.l.b16 %v930
    %v971 = vunpack.c.l.b16 %v931
    %v972 = vunpack.c.l.b16 %v932
    %v973 = vunpack.c.l.b16 %v933
    %v974 = vunpack.c.l.b16 %v934
    %v975 = vunpack.c.l.b16 %v935
    %v976 = vunpack.c.l.b16 %v936
    %v977 = vunpack.c.l.b16 %v937
    %v978 = vpack.c.b16 %v963, %v962
    %v979 = vpack.c.b16 %v965, %v964
    %v980 = vpack.c.b16 %v967, %v966
    %v981 = vpack.c.b16 %v969, %v968
    %v982 = vpack.c.b16 %v971, %v970
    %v983 = vpack.c.b16 %v973, %v972
    %v984 = vpack.c.b16 %v975, %v974
    %v985 = vpack.c.b16 %v977, %v976
    %994 = vmatprep.subr.bf16.mxu0 0
    %995 = vmatpush1.bf16.msra.mxu0 %v985
    %996 = vmatprep.subr.bf16.mxu0 0
    %997 = vmatpush1.bf16.msra.mxu0 %v984
    %998 = vmatprep.subr.bf16.mxu0 0
    %999 = vmatpush1.bf16.msra.mxu0 %v983
    %1000 = vmatprep.subr.bf16.mxu0 0
    %1001 = vmatpush1.bf16.msra.mxu0 %v982
    %1002 = vmatprep.subr.bf16.mxu0 0
    %1003 = vmatpush1.bf16.msra.mxu0 %v981
    %1004 = vmatprep.subr.bf16.mxu0 0
    %1005 = vmatpush1.bf16.msra.mxu0 %v980
    %1006 = vmatprep.subr.bf16.mxu0 0
    %1007 = vmatpush1.bf16.msra.mxu0 %v979
    %1008 = vmatprep.subr.bf16.mxu0 0
    %1009 = vmatpush1.bf16.msra.mxu0 %v978
    %1010 = vmatprep.subr.bf16.mxu0 0
    %1011 = vmatpush2.bf16.msra.mxu0 0
    %1012 = vmatprep.subr.bf16.mxu0 0
    %1013 = vmatpush2.bf16.msra.mxu0 0
    %1014 = vmatprep.subr.bf16.mxu0 0
    %1015 = vmatpush2.bf16.msra.mxu0 0
    %1016 = vmatprep.subr.bf16.mxu0 0
    %1017 = vmatpush2.bf16.msra.mxu0 0
    %1018 = vmatprep.subr.bf16.mxu0 0
    %1019 = vmatpush2.bf16.msra.mxu0 0
    %1020 = vmatprep.subr.bf16.mxu0 0
    %1021 = vmatpush2.bf16.msra.mxu0 0
    %1022 = vmatprep.subr.bf16.mxu0 0
    %1023 = vmatpush2.bf16.msra.mxu0 0
    %1024 = vmatprep.subr.bf16.mxu0 0
    %1025 = vmatpush2.bf16.msra.mxu0 0
    %1026 = vmatprep.mubr.bf16.mxu0 0
    %1027 = vmatmul.mubr.bf16.gmra.mxu0 %v919
    %v1028 = vpop.f32.mrf.mxu0
    %v1029 = vadd.f32 %v944, %v1028
    %v1030 = vpop.f32.mrf.mxu0
    %v1031 = vpop.f32.mrf.mxu0
    %v1032 = vadd.f32 %v944, %v1031
    %v1033 = vpop.f32.mrf.mxu0
    %1034 = vmatprep.mubr.bf16.mxu0 0
    %1035 = vmatmul.mubr.bf16.gmra.mxu0 %v920
    %v1036 = vpop.f32.mrf.mxu0
    %v1037 = vadd.f32 %v944, %v1036
    %v1038 = vpop.f32.mrf.mxu0
    %v1039 = vpop.f32.mrf.mxu0
    %v1040 = vpop.f32.mrf.mxu0
    %1041 = vdwg.mxu0
    %v1042 = vmul.f32 %v1029, %v1029
    %v1043 = vmul.f32 %v1032, %v1032
    %v1044 = vmul.f32 %v1037, %v1037
    %v1045 = vsel %vm514, %v1042, 0.0
    %1046 = vadd.xlane.f32.xlu0 %v1045
    %v1047 = vpop.xlane.xlu0 %1046
    %v1048 = vsel %vm514, %v1043, 0.0
    %1049 = vadd.xlane.f32.xlu0 %v1048
    %v1050 = vpop.xlane.xlu0 %1049
    %v1051 = vsel %vm514, %v1044, 0.0
    %1052 = vadd.xlane.f32.xlu0 %v1051
    %v1053 = vpop.xlane.xlu0 %1052
    %v1054 = vmax.f32 %v1047, 1e-16
    %v1055 = vmax.f32 %v1050, 1e-16
    %v1056 = vmax.f32 %v1053, 1e-16
    %v1057 = vrsqrt.pop %v1054
    %v1058 = vrsqrt.pop %v1055
    %v1059 = vrsqrt.pop %v1056
    %v1060 = vmul.f32 %v1029, %v1057
    %v1061 = vmul.f32 %v1032, %v1058
    %v1062 = vmul.f32 %v1037, %v1059
    %v1063 = vmul.f32 %v1060, 10.0
    %v1064 = vmul.f32 %v525, 10.0
    %v1065 = vmul.f32 %v1060, 8.0
    %v1066 = vmul.f32 %v1062, 12.0
    %v1067 = vadd.f32 %v1065, %v1066
    %v1069 = vsel %vm514, %v1063, 0
    %v1072 = vsel %vm514, %v1064, 0
    %v1075 = vsel %vm514, %v1067, 0
    %v1078 = vsel %vm514, %v1061, 0
    %v1081 = vsel %vm514, %v526, 0
    %v1084 = vsel %vm514, %v525, 0
    %1086 = vmatprep.subr.mxu0 0.0
    %1087 = vmatpush1.xpose.msra.mxu0 0.0
    %1088 = vmatprep.subr.mxu0 0.0
    %1089 = vmatpush1.xpose.msra.mxu0 0.0
    %1090 = vmatprep.subr.mxu0 0.0
    %1091 = vmatpush1.xpose.msra.mxu0 0.0
    %1092 = vmatprep.subr.mxu0 0.0
    %1093 = vmatpush1.xpose.msra.mxu0 0.0
    %1094 = vmatprep.subr.mxu0 0.0
    %1095 = vmatpush1.xpose.msra.mxu0 0.0
    %1096 = vmatprep.subr.mxu0 0.0
    %1097 = vmatpush1.xpose.msra.mxu0 0.0
    %1098 = vmatprep.subr.mxu0 0.0
    %1099 = vmatpush1.xpose.msra.mxu0 0.0
    %1100 = vmatprep.subr.mxu0 0.0
    %1101 = vmatpush1.xpose.msra.mxu0 0.0
    %1102 = vmatprep.subr.mxu0 0.0
    %1103 = vmatpush1.xpose.msra.mxu0 0.0
    %1104 = vmatprep.subr.mxu0 0.0
    %1105 = vmatpush1.xpose.msra.mxu0 0.0
    %1106 = vmatprep.subr.mxu0 0.0
    %1107 = vmatpush1.xpose.msra.mxu0 0.0
    %1108 = vmatprep.subr.mxu0 0.0
    %1109 = vmatpush1.xpose.msra.mxu0 0.0
    %1110 = vmatprep.subr.mxu0 0.0
    %1111 = vmatpush1.xpose.msra.mxu0 0.0
    %1112 = vmatprep.subr.mxu0 0.0
    %1113 = vmatpush1.xpose.msra.mxu0 %v1084
    %1114 = vmatprep.subr.mxu0 0.0
    %1115 = vmatpush1.xpose.msra.mxu0 %v1081
    %1116 = vmatprep.subr.mxu0 0.0
    %1117 = vmatpush1.xpose.msra.mxu0 %v1078
    %1118 = vmatprep.subr.mxu0 0.0
    %1119 = vmatpush2.xpose.msra.mxu0 0.0
    %1120 = vmatprep.subr.mxu0 0.0
    %1121 = vmatpush2.xpose.msra.mxu0 0.0
    %1122 = vmatprep.subr.mxu0 0.0
    %1123 = vmatpush2.xpose.msra.mxu0 0.0
    %1124 = vmatprep.subr.mxu0 0.0
    %1125 = vmatpush2.xpose.msra.mxu0 0.0
    %1126 = vmatprep.subr.mxu0 0.0
    %1127 = vmatpush2.xpose.msra.mxu0 0.0
    %1128 = vmatprep.subr.mxu0 0.0
    %1129 = vmatpush2.xpose.msra.mxu0 0.0
    %1130 = vmatprep.subr.mxu0 0.0
    %1131 = vmatpush2.xpose.msra.mxu0 0.0
    %1132 = vmatprep.subr.mxu0 0.0
    %1133 = vmatpush2.xpose.msra.mxu0 0.0
    %1134 = vmatprep.subr.mxu0 0.0
    %1135 = vmatpush2.xpose.msra.mxu0 0.0
    %1136 = vmatprep.subr.mxu0 0.0
    %1137 = vmatpush2.xpose.msra.mxu0 0.0
    %1138 = vmatprep.subr.mxu0 0.0
    %1139 = vmatpush2.xpose.msra.mxu0 0.0
    %1140 = vmatprep.subr.mxu0 0.0
    %1141 = vmatpush2.xpose.msra.mxu0 0.0
    %1142 = vmatprep.subr.mxu0 0.0
    %1143 = vmatpush2.xpose.msra.mxu0 0.0
    %1144 = vmatprep.subr.mxu0 0.0
    %1145 = vmatpush2.xpose.msra.mxu0 0.0
    %1146 = vmatprep.subr.mxu0 0.0
    %1147 = vmatpush2.xpose.msra.mxu0 0.0
    %1148 = vmatprep.subr.mxu0 0.0
    %1149 = vmatpush2.xpose.msra.mxu0 0.0
    %1150 = vmatprep.mubr.f32.mxu0 0.0
    %1151 = vmatmul.mubr.f32.gmra.mxu0 %v1069
    %v1152 = vpop.f32.mrf.mxu0
    %v1153 = vadd.f32 0.0, %v1152
    %v1154 = vpop.f32.mrf.mxu0
    %1155 = vmatprep.mubr.f32.mxu0 0.0
    %1156 = vmatmul.mubr.f32.gmra.mxu0 %v1072
    %v1157 = vpop.f32.mrf.mxu0
    %v1158 = vadd.f32 0.0, %v1157
    %v1159 = vpop.f32.mrf.mxu0
    %1160 = vmatprep.mubr.f32.mxu0 0.0
    %1161 = vmatmul.mubr.f32.gmra.mxu0 %v1075
    %v1162 = vpop.f32.mrf.mxu0
    %v1163 = vadd.f32 0.0, %v1162
    %v1164 = vpop.f32.mrf.mxu0
    %1165 = vdwg.mxu0
    %v1166 = vlaneseq
    %v1167 = vshrl.u32 %v1166, 7
    %v1168 = vadd.s32 %v1167, 8
    %v1169 = vadd.s32 %v1167, 16
    %v1170 = vlaneseq
    %v1171 = vand.u32 %v1170, 127
    %vm1172 = vcmp.ge.s32.totalorder %v1167, 8
    %vm1173 = vcmp.ge.s32.totalorder %v1168, 8
    %vm1174 = vcmp.ge.s32.totalorder %v1169, 8
    %v1175 = vsel %vm1172, 1, 0
    %v1176 = vsel %vm1173, 1, 0
    %v1177 = vsel %vm1174, 1, 0
    %vm1178 = vcmp.ge.s32.totalorder %v1167, 16
    %vm1179 = vcmp.ge.s32.totalorder %v1168, 16
    %vm1180 = vcmp.ge.s32.totalorder %v1169, 16
    %v1181 = vsel %vm1178, 1, 0
    %v1182 = vsel %vm1179, 1, 0
    %v1183 = vsel %vm1180, 1, 0
    %v1184 = vadd.s32 %v1175, %v1181
    %v1185 = vadd.s32 %v1176, %v1182
    %v1186 = vadd.s32 %v1177, %v1183
    %vm1187 = vcmp.ge.s32.totalorder %v1171, 8
    %v1188 = vsel %vm1187, 1, 0
    %vm1189 = vcmp.ge.s32.totalorder %v1171, 16
    %v1190 = vsel %vm1189, 1, 0
    %v1191 = vadd.s32 %v1188, %v1190
    %vm1192 = vcmp.eq.s32.totalorder %v1184, %v1191
    %vm1193 = vcmp.eq.s32.totalorder %v1185, %v1191
    %vm1194 = vcmp.eq.s32.totalorder %v1186, %v1191
    %v1195 = vld [vmem:[%s3] sm:$0xff]
    %v1196 = vadd.s32 %v1195, 16
    %1197 = vset.pattern.permute.xlu0 0
    %1198 = vperm.xlu0 %1197, %v1167
    %v1199 = vpop.permute.xlu0 %1198
    %1200 = vset.pattern.permute.xlu0 0
    %1201 = vperm.xlu0 %1200, %v1168
    %v1202 = vpop.permute.xlu0 %1201
    %1203 = vset.pattern.permute.xlu0 0
    %1204 = vperm.xlu0 %1203, %v1196
    %v1205 = vpop.permute.xlu0 %1204
    %vm1206 = vcmp.eq.s32.totalorder %v1171, %v1199
    %vm1207 = vcmp.eq.s32.totalorder %v1171, %v1202
    %vm1208 = vcmp.eq.s32.totalorder %v1171, %v1205
    %v1209 = vsel %vm1192, %v1153, -1e+30
    %v1210 = vsel %vm1193, %v1158, -1e+30
    %v1211 = vsel %vm1194, %v1163, -1e+30
    %vm1212 = vcmask 195584
    %v1213 = vsel %vm1212, %v1209, -inf
    %1214 = vmax.xlane.f32.xlu0 %v1213
    %v1215 = vpop.xlane.xlu0 %1214
    %v1216 = vsel %vm1212, %v1210, -inf
    %1217 = vmax.xlane.f32.xlu0 %v1216
    %v1218 = vpop.xlane.xlu0 %1217
    %v1219 = vsel %vm1212, %v1211, -inf
    %1220 = vmax.xlane.f32.xlu0 %v1219
    %v1221 = vpop.xlane.xlu0 %1220
    %v1222 = vsub.f32 %v1209, %v1215
    %v1223 = vsub.f32 %v1210, %v1218
    %v1224 = vsub.f32 %v1211, %v1221
    %v1225 = vmul.f32 %v1222, 1.442695
    %v1226 = vpow.pop %v1225
    %v1227 = vmul.f32 %v1223, 1.442695
    %v1228 = vpow.pop %v1227
    %v1229 = vmul.f32 %v1224, 1.442695
    %v1230 = vpow.pop %v1229
    %v1231 = vsel %vm1212, %v1226, 0.0
    %1232 = vadd.xlane.f32.xlu0 %v1231
    %v1233 = vpop.xlane.xlu0 %1232
    %v1234 = vsel %vm1212, %v1228, 0.0
    %1235 = vadd.xlane.f32.xlu0 %v1234
    %v1236 = vpop.xlane.xlu0 %1235
    %v1237 = vsel %vm1212, %v1230, 0.0
    %1238 = vadd.xlane.f32.xlu0 %v1237
    %v1239 = vpop.xlane.xlu0 %1238
    %v1240 = vlog2.pop %v1233
    %v1241 = vmul.f32 %v1240, 0.6931472
    %v1242 = vlog2.pop %v1236
    %v1243 = vmul.f32 %v1242, 0.6931472
    %v1244 = vlog2.pop %v1239
    %v1245 = vmul.f32 %v1244, 0.6931472
    %v1246 = vadd.f32 %v1215, %v1241
    %v1247 = vadd.f32 %v1218, %v1243
    %v1248 = vadd.f32 %v1221, %v1245
    %v1249 = vsel %vm1206, %v1153, 0.0
    %v1250 = vsel %vm1207, %v1158, 0.0
    %v1251 = vsel %vm1208, %v1163, 0.0
    %v1252 = vsel %vm1212, %v1249, 0.0
    %1253 = vadd.xlane.f32.xlu0 %v1252
    %v1254 = vpop.xlane.xlu0 %1253
    %v1255 = vsel %vm1212, %v1250, 0.0
    %1256 = vadd.xlane.f32.xlu0 %v1255
    %v1257 = vpop.xlane.xlu0 %1256
    %v1258 = vsel %vm1212, %v1251, 0.0
    %1259 = vadd.xlane.f32.xlu0 %v1258
    %v1260 = vpop.xlane.xlu0 %1259
    %v1261 = vsub.f32 %v1246, %v1254
    %v1262 = vsub.f32 %v1247, %v1257
    %v1263 = vsub.f32 %v1248, %v1260
    %vm1264 = vcmask 7168
    %v1265 = vsel %vm1264, %v1261, 0.0
    %1266 = vadd.xlane.f32.xlu0 %v1265
    %v1267 = vpop.xlane.xlu0 %1266
    %v1268 = vrot.slane %v1267, 4
    %v1269 = vadd.f32 %v1267, %v1268
    %v1270 = vrot.slane %v1269, 2
    %v1271 = vadd.f32 %v1269, %v1270
    %v1272 = vrot.slane %v1271, 1
    %v1273 = vadd.f32 %v1271, %v1272
    %s1274 = vtos %v1273
    %s1275 = smul.f32 %s1274, 0.125
    %v1276 = vsel %vm1264, %v1262, 0.0
    %1277 = vadd.xlane.f32.xlu0 %v1276
    %v1278 = vpop.xlane.xlu0 %1277
    %v1279 = vrot.slane %v1278, 4
    %v1280 = vadd.f32 %v1278, %v1279
    %v1281 = vrot.slane %v1280, 2
    %v1282 = vadd.f32 %v1280, %v1281
    %v1283 = vrot.slane %v1282, 1
    %v1284 = vadd.f32 %v1282, %v1283
    %s1285 = vtos %v1284
    %s1286 = smul.f32 %s1285, 0.125
    %v1287 = vsel %vm1264, %v1263, 0.0
    %1288 = vadd.xlane.f32.xlu0 %v1287
    %v1289 = vpop.xlane.xlu0 %1288
    %v1290 = vrot.slane %v1289, 4
    %v1291 = vadd.f32 %v1289, %v1290
    %v1292 = vrot.slane %v1291, 2
    %v1293 = vadd.f32 %v1291, %v1292
    %v1294 = vrot.slane %v1293, 1
    %v1295 = vadd.f32 %v1293, %v1294
    %s1296 = vtos %v1295
    %s1297 = smul.f32 %s1296, 0.125
    %vm1298 = vcmp.eq.s32.totalorder %v1171, 0
    %vm1299 = vcmp.eq.s32.totalorder %v1171, 1
    %vm1300 = vcmp.eq.s32.totalorder %v1171, 2
    %v1301 = vstv %s1297
    %v1302 = vsel %vm1300, %v1301, 0.0
    %v1303 = vstv %s1286
    %v1304 = vsel %vm1299, %v1303, %v1302
    %v1305 = vstv %s1275
    %v1306 = vsel %vm1298, %v1305, %v1304
    %1307 = vst [vmem:[%s7] sm:$0x1] %v1306
    // Predicated region
    $region34: #{cl_for_fact_forward.1} parent=1 // pred_check
      _
    $region35: #{cl_for_fact_forward.1} parent=1 // pred_check_branch
      %1309 = sbr.rel (0) target = $region37
    $region36: #{cl_for_fact_forward.1} parent=1 // pred_region
      _
    $region37: #{cl_for_fact_forward.1} parent=1 // pred_fallthru
      _
    // Predicated region
    $region38: #{cl_for_fact_forward.1} parent=1 // pred_check
      _
    $region39: #{cl_for_fact_forward.1} parent=1 // pred_check_branch
      %1311 = sbr.rel (0) target = $region41
    $region40: #{cl_for_fact_forward.1} parent=1 // pred_region
      _
    $region41: #{cl_for_fact_forward.1} parent=1 // pred_fallthru
      _
    %1312 = vsyncpa [#allocation3], 1

</llo_original>
